<compile_context>
chip_gen: v7x
topology: tpu7x:2x2x1
jax: 0.10.0
libtpu: 0.0.40
codegen_flags: <defaults>
</compile_context>

<pallas_src>
import jax
import jax.numpy as jnp
from jax.experimental import pallas as pl
from jax.experimental.pallas import tpu as pltpu

OUT_DIM = 784          # real output width (28*28)
OUT_PAD = 896          # padded to 7*128 for lane-dense stores
H1, H2 = 256, 512


def _round_up(x, m):
    return ((x + m - 1) // m) * m


def _leaky_relu(x, negative_slope=0.2):
    return jnp.where(x > 0, x, negative_slope * x)


def generator_kernel(z_ref, w1_ref, b1_ref, w2_ref, b2_ref, w3_ref, b3_ref, out_ref):
    # Layer 1: Linear(latent_dim, 256) + LeakyReLU(0.2)
    h = jnp.dot(z_ref[...].astype(jnp.bfloat16), w1_ref[...],
                preferred_element_type=jnp.float32)
    h = _leaky_relu(h + b1_ref[...])

    # Layer 2: Linear(256, 512) + LeakyReLU(0.2)
    h = jnp.dot(h.astype(jnp.bfloat16), w2_ref[...],
                preferred_element_type=jnp.float32)
    h = _leaky_relu(h + b2_ref[...])

    # Layer 3: Linear(512, 896[=784 padded]) + Tanh  (padded cols are all-zero)
    h = jnp.dot(h.astype(jnp.bfloat16), w3_ref[...],
                preferred_element_type=jnp.float32)
    out_ref[...] = jnp.tanh(h + b3_ref[...])


def generator_forward(z, params, *, tile_b=256):
    """Fused Generator MLP as a batch-tiled Pallas kernel.

    z: (B, latent_dim) float32
    params: dict with f32 w1 (L,256), b1 (1,256), w2 (256,512), b2 (1,512),
            w3 (512,784), b3 (1,784)
    returns: (B, 784) float32
    """
    B, L = z.shape

    # Effective batch tile: multiple of 8, capped by requested tile_b.
    tb = min(tile_b, _round_up(B, 8))
    b_pad = _round_up(B, tb)
    if b_pad != B:
        z = jnp.pad(z, ((0, b_pad - B), (0, 0)))

    # bf16 MXU inputs (f32 accumulation inside the kernel); biases stay f32.
    w1 = params["w1"].astype(jnp.bfloat16)
    w2 = params["w2"].astype(jnp.bfloat16)
    w3 = jnp.pad(params["w3"], ((0, 0), (0, OUT_PAD - OUT_DIM))).astype(jnp.bfloat16)
    b1 = params["b1"].astype(jnp.float32)
    b2 = params["b2"].astype(jnp.float32)
    b3 = jnp.pad(params["b3"], ((0, 0), (0, OUT_PAD - OUT_DIM))).astype(jnp.float32)

    grid = (b_pad // tb,)

    # Constant index maps keep the weights/biases VMEM-resident across steps.
    const = lambda i: (0, 0)

    flops = 2 * b_pad * (L * H1 + H1 * H2 + H2 * OUT_PAD)
    bytes_accessed = (
        z.size * 4 + b_pad * OUT_PAD * 4
        + (w1.size + w2.size + w3.size) * 2
        + (b1.size + b2.size + b3.size) * 4
    )

    out = pl.pallas_call(
        generator_kernel,
        out_shape=jax.ShapeDtypeStruct((b_pad, OUT_PAD), jnp.float32),
        grid=grid,
        in_specs=[
            pl.BlockSpec((tb, L), lambda i: (i, 0)),       # z tile
            pl.BlockSpec((L, H1), const),                  # w1
            pl.BlockSpec((1, H1), const),                  # b1
            pl.BlockSpec((H1, H2), const),                 # w2
            pl.BlockSpec((1, H2), const),                  # b2
            pl.BlockSpec((H2, OUT_PAD), const),            # w3 (padded)
            pl.BlockSpec((1, OUT_PAD), const),             # b3 (padded)
        ],
        out_specs=pl.BlockSpec((tb, OUT_PAD), lambda i: (i, 0)),
        compiler_params=pltpu.CompilerParams(
            dimension_semantics=("parallel",),
            vmem_limit_bytes=32 << 20,
        ),
        cost_estimate=pl.CostEstimate(
            flops=flops,
            transcendentals=b_pad * OUT_PAD,
            bytes_accessed=bytes_accessed,
        ),
    )(z, w1, b1, w2, b2, w3, b3)

    return out[:B, :OUT_DIM]


def init_params(key, latent_dim):
    """Deterministic synthetic parameter init (PyTorch-Linear-like uniform fan-in)."""
    dims = [(latent_dim, H1), (H1, H2), (H2, OUT_DIM)]
    params = {}
    for i, (fan_in, fan_out) in enumerate(dims, start=1):
        key, kw, kb = jax.random.split(key, 3)
        bound = 1.0 / jnp.sqrt(jnp.float32(fan_in))
        params[f"w{i}"] = jax.random.uniform(
            kw, (fan_in, fan_out), jnp.float32, -bound, bound
        )
        # biases kept as (1, out) rows so they broadcast cleanly inside the kernel
        params[f"b{i}"] = jax.random.uniform(
            kb, (1, fan_out), jnp.float32, -bound, bound
        )
    return params


def reference_forward(z, params):
    """Pure-JAX f32 reference for correctness checking."""
    h = z @ params["w1"] + params["b1"]
    h = jnp.where(h > 0, h, 0.2 * h)
    h = h @ params["w2"] + params["b2"]
    h = jnp.where(h > 0, h, 0.2 * h)
    h = h @ params["w3"] + params["b3"]
    return jnp.tanh(h)


if __name__ == "__main__":
    latent_dim = 32
    batch = 8

    key = jax.random.PRNGKey(0)
    key, kz = jax.random.split(key)
    z = jax.random.normal(kz, (batch, latent_dim), dtype=jnp.float32)

    params = init_params(key, latent_dim)

    img = generator_forward(z, params)
    img = jax.block_until_ready(img)

    ref = reference_forward(z, params)
    assert img.shape == (batch, OUT_DIM), img.shape
    # bf16 MXU inputs (f32 accumulation) vs pure-f32 reference -> loose tolerance.
    max_err = float(jnp.max(jnp.abs(img - ref)))
    assert max_err < 8e-2, f"mismatch vs reference, max abs err = {max_err}"

    print("KERNEL_OK")
</pallas_src>

<mosaic_0001>
module attributes {stable_mosaic.version = 11 : i64} {
  func.func @generator_kernel(%arg0: i32, %arg1: memref<8x32xf32, #tpu.memory_space<vmem>>, %arg2: memref<32x256xbf16, #tpu.memory_space<vmem>>, %arg3: memref<1x256xf32, #tpu.memory_space<vmem>>, %arg4: memref<256x512xbf16, #tpu.memory_space<vmem>>, %arg5: memref<1x512xf32, #tpu.memory_space<vmem>>, %arg6: memref<512x896xbf16, #tpu.memory_space<vmem>>, %arg7: memref<1x896xf32, #tpu.memory_space<vmem>>, %arg8: memref<8x896xf32, #tpu.memory_space<vmem>>) attributes {dimension_semantics = [#tpu.dimension_semantics<parallel>], iteration_bounds = array<i64: 1>, scalar_prefetch = 0 : i64, scratch_operands = 0 : i64, tpu.core_type = #tpu.core_type<tc>, window_params = [{transform_indices = @transform_0, window_bounds = array<i64: 8, 32>}, {pipeline_mode = #tpu.pipeline_mode<synchronous>, transform_indices = @transform_1, window_bounds = array<i64: 32, 256>}, {pipeline_mode = #tpu.pipeline_mode<synchronous>, transform_indices = @transform_2, window_bounds = array<i64: 1, 256>}, {pipeline_mode = #tpu.pipeline_mode<synchronous>, transform_indices = @transform_3, window_bounds = array<i64: 256, 512>}, {pipeline_mode = #tpu.pipeline_mode<synchronous>, transform_indices = @transform_4, window_bounds = array<i64: 1, 512>}, {pipeline_mode = #tpu.pipeline_mode<synchronous>, transform_indices = @transform_5, window_bounds = array<i64: 512, 896>}, {pipeline_mode = #tpu.pipeline_mode<synchronous>, transform_indices = @transform_6, window_bounds = array<i64: 1, 896>}, {transform_indices = @transform_7, window_bounds = array<i64: 8, 896>}]} {
    %c0 = arith.constant 0 : index
    %c0_0 = arith.constant 0 : index
    %0 = vector.load %arg1[%c0, %c0_0] : memref<8x32xf32, #tpu.memory_space<vmem>>, vector<8x32xf32>
    %1 = arith.truncf %0 : vector<8x32xf32> to vector<8x32xbf16>
    %c0_1 = arith.constant 0 : index
    %c0_2 = arith.constant 0 : index
    %2 = vector.load %arg2[%c0_1, %c0_2] : memref<32x256xbf16, #tpu.memory_space<vmem>>, vector<32x256xbf16>
    %cst = arith.constant dense<0.000000e+00> : vector<8x256xf32>
    %3 = tpu.matmul %1, %2, %cst {dimension_numbers = #tpu.dot_dimension_numbers<[1], [0], [0], [1], [0, 0, 1, 1], [], []>} : vector<8x32xbf16>, vector<32x256xbf16>, vector<8x256xf32> -> vector<8x256xf32>
    %c0_3 = arith.constant 0 : index
    %c0_4 = arith.constant 0 : index
    %4 = vector.load %arg3[%c0_3, %c0_4] : memref<1x256xf32, #tpu.memory_space<vmem>>, vector<1x256xf32>
    %5 = vector.broadcast %4 : vector<1x256xf32> to vector<8x256xf32>
    %6 = arith.addf %3, %5 : vector<8x256xf32>
    %cst_5 = arith.constant 0.000000e+00 : f32
    %7 = vector.broadcast %cst_5 : f32 to vector<8x256xf32>
    %8 = arith.cmpf ogt, %6, %7 : vector<8x256xf32>
    %cst_6 = arith.constant 2.000000e-01 : f32
    %9 = vector.broadcast %cst_6 : f32 to vector<8x256xf32>
    %10 = arith.mulf %9, %6 : vector<8x256xf32>
    %11 = arith.select %8, %6, %10 : vector<8x256xi1>, vector<8x256xf32>
    %12 = arith.truncf %11 : vector<8x256xf32> to vector<8x256xbf16>
    %c0_7 = arith.constant 0 : index
    %c0_8 = arith.constant 0 : index
    %13 = vector.load %arg4[%c0_7, %c0_8] : memref<256x512xbf16, #tpu.memory_space<vmem>>, vector<256x512xbf16>
    %cst_9 = arith.constant dense<0.000000e+00> : vector<8x512xf32>
    %14 = tpu.matmul %12, %13, %cst_9 {dimension_numbers = #tpu.dot_dimension_numbers<[1], [0], [0], [1], [0, 0, 1, 1], [], []>} : vector<8x256xbf16>, vector<256x512xbf16>, vector<8x512xf32> -> vector<8x512xf32>
    %c0_10 = arith.constant 0 : index
    %c0_11 = arith.constant 0 : index
    %15 = vector.load %arg5[%c0_10, %c0_11] : memref<1x512xf32, #tpu.memory_space<vmem>>, vector<1x512xf32>
    %16 = vector.broadcast %15 : vector<1x512xf32> to vector<8x512xf32>
    %17 = arith.addf %14, %16 : vector<8x512xf32>
    %cst_12 = arith.constant 0.000000e+00 : f32
    %18 = vector.broadcast %cst_12 : f32 to vector<8x512xf32>
    %19 = arith.cmpf ogt, %17, %18 : vector<8x512xf32>
    %cst_13 = arith.constant 2.000000e-01 : f32
    %20 = vector.broadcast %cst_13 : f32 to vector<8x512xf32>
    %21 = arith.mulf %20, %17 : vector<8x512xf32>
    %22 = arith.select %19, %17, %21 : vector<8x512xi1>, vector<8x512xf32>
    %23 = arith.truncf %22 : vector<8x512xf32> to vector<8x512xbf16>
    %c0_14 = arith.constant 0 : index
    %c0_15 = arith.constant 0 : index
    %24 = vector.load %arg6[%c0_14, %c0_15] : memref<512x896xbf16, #tpu.memory_space<vmem>>, vector<512x896xbf16>
    %cst_16 = arith.constant dense<0.000000e+00> : vector<8x896xf32>
    %25 = tpu.matmul %23, %24, %cst_16 {dimension_numbers = #tpu.dot_dimension_numbers<[1], [0], [0], [1], [0, 0, 1, 1], [], []>} : vector<8x512xbf16>, vector<512x896xbf16>, vector<8x896xf32> -> vector<8x896xf32>
    %c0_17 = arith.constant 0 : index
    %c0_18 = arith.constant 0 : index
    %26 = vector.load %arg7[%c0_17, %c0_18] : memref<1x896xf32, #tpu.memory_space<vmem>>, vector<1x896xf32>
    %27 = vector.broadcast %26 : vector<1x896xf32> to vector<8x896xf32>
    %28 = arith.addf %25, %27 : vector<8x896xf32>
    %29 = math.tanh %28 : vector<8x896xf32>
    %c0_19 = arith.constant 0 : index
    %c0_20 = arith.constant 0 : index
    %30 = vector.load %arg8[%c0_19, %c0_20] : memref<8x896xf32, #tpu.memory_space<vmem>>, vector<8x896xf32>
    tpu.vector_store %arg8[%c0_19, %c0_20], %29 {strides = array<i32>} : memref<8x896xf32, #tpu.memory_space<vmem>>, vector<8x896xf32>,
    return
  }
  func.func @transform_0(%arg0: i32) -> (i32, i32) {
    %c0_i32 = arith.constant 0 : i32
    %c0_i32_0 = arith.constant 0 : i32
    return %arg0, %c0_i32 : i32, i32
  }
  func.func @transform_1(%arg0: i32) -> (i32, i32) {
    %c0_i32 = arith.constant 0 : i32
    %c0_i32_0 = arith.constant 0 : i32
    %c0_i32_1 = arith.constant 0 : i32
    return %c0_i32, %c0_i32_0 : i32, i32
  }
  func.func @transform_2(%arg0: i32) -> (i32, i32) {
    %c0_i32 = arith.constant 0 : i32
    %c0_i32_0 = arith.constant 0 : i32
    %c0_i32_1 = arith.constant 0 : i32
    return %c0_i32, %c0_i32_0 : i32, i32
  }
  func.func @transform_3(%arg0: i32) -> (i32, i32) {
    %c0_i32 = arith.constant 0 : i32
    %c0_i32_0 = arith.constant 0 : i32
    %c0_i32_1 = arith.constant 0 : i32
    return %c0_i32, %c0_i32_0 : i32, i32
  }
  func.func @transform_4(%arg0: i32) -> (i32, i32) {
    %c0_i32 = arith.constant 0 : i32
    %c0_i32_0 = arith.constant 0 : i32
    %c0_i32_1 = arith.constant 0 : i32
    return %c0_i32, %c0_i32_0 : i32, i32
  }
  func.func @transform_5(%arg0: i32) -> (i32, i32) {
    %c0_i32 = arith.constant 0 : i32
    %c0_i32_0 = arith.constant 0 : i32
    %c0_i32_1 = arith.constant 0 : i32
    return %c0_i32, %c0_i32_0 : i32, i32
  }
  func.func @transform_6(%arg0: i32) -> (i32, i32) {
    %c0_i32 = arith.constant 0 : i32
    %c0_i32_0 = arith.constant 0 : i32
    %c0_i32_1 = arith.constant 0 : i32
    return %c0_i32, %c0_i32_0 : i32, i32
  }
  func.func @transform_7(%arg0: i32) -> (i32, i32) {
    %c0_i32 = arith.constant 0 : i32
    %c0_i32_0 = arith.constant 0 : i32
    return %arg0, %c0_i32 : i32, i32
  }
}

</mosaic_0001>

<llo_original>
// kernel: tpu_custom_call.1
$region0: #{tpu_custom_call.1}
  #allocation0 [shape = 'u32[]', space=smem, size = 0x4, offset = 0x4, fixed_abs, tag = 'smem constant byte address 0x4 - core index']
  #allocation1 [shape = 'u32[144,128]{1,0:T(1,128)}', space=vmem, size = 0x12000, scoped, tag = 'internal scratch']
  %s0 = inlined_call_operand.hbm [shape: f32[8,32], index: 0, kind: input, shape index: {}]
  %s1 = inlined_call_operand.hbm [shape: bf16[32,256], index: 1, kind: input, shape index: {}]
  %s2 = inlined_call_operand.vmem [shape: f32[1,256], index: 2, kind: input, shape index: {}]
  %s3 = inlined_call_operand.hbm [shape: bf16[256,512], index: 3, kind: input, shape index: {}]
  %s4 = inlined_call_operand.vmem [shape: f32[1,512], index: 4, kind: input, shape index: {}]
  %s5 = inlined_call_operand.hbm [shape: bf16[512,896], index: 5, kind: input, shape index: {}]
  %s6 = inlined_call_operand.vmem [shape: f32[1,896], index: 6, kind: input, shape index: {}]
  %s7 = inlined_call_operand.hbm [shape: f32[8,896], index: 7, kind: output, shape index: {}]
  %s8 = sld [smem:[#allocation0]]
  $region54: #{tpu_custom_call.1} parent=0
    _
  %s10 = ssub.s32 1, %s8
  %s11 = scalar_select 0, %s10, %s8
  $region1: #{tpu_custom_call.1} parent=0
    #allocation2 [shape = 'u8[4096]{0}', space=vmem, size = 0x1000, scoped, tag = 'input window, operand 0, single buffered']
    #allocation3 [shape = 's32[1]{0}', space=sflag, size = 0x4, scoped, tag = 'scoped memory for tpu_custom_call.1']
    #allocation4 [shape = 's32[1]{0}', space=sflag, size = 0x4, scoped, tag = 'scoped memory for tpu_custom_call.1']
    #allocation5 [shape = 'u8[16384]{0}', space=vmem, size = 0x4000, scoped, tag = 'input window, operand 1, single buffered']
    #allocation6 [shape = 's32[1]{0}', space=sflag, size = 0x4, scoped, tag = 'scoped memory for tpu_custom_call.1']
    #allocation7 [shape = 'u8[262144]{0}', space=vmem, size = 0x40000, scoped, tag = 'input window, operand 3, single buffered']
    #allocation8 [shape = 'u8[917504]{0}', space=vmem, size = 0xe0000, scoped, tag = 'input window, operand 5, single buffered']
    #allocation9 [shape = 's32[1]{0}', space=sflag, size = 0x4, scoped, tag = 'scoped memory for tpu_custom_call.1']
    #allocation10 [shape = 'u8[28672]{0}', space=vmem, size = 0x7000, scoped, tag = 'output window, operand 0, single buffered']
    %12 = vsyncpa [#allocation3], 0
    %13 = vsyncpa [#allocation6], 0
    %14 = vsyncpa [#allocation9], 0
    %15 = vsyncpa [#allocation4], 0
    // Predicated region
    $region2: #{tpu_custom_call.1} parent=1 // pred_check
      _
    $region3: #{tpu_custom_call.1} parent=1 // pred_check_branch
      %17 = sbr.rel (0) target = $region5
    $region4: #{tpu_custom_call.1} parent=1 // pred_region
      %s19 = ssub.s32 128, 128
      %20 = vsyncadd [#allocation3], %s19
      %s22 = sshll.u32 [#allocation2], 4
      %s23 = int_to_ptr.vmem [resolvable:$true] %s22
      %25 = dma.hbm_to_vmem [thread:$0]  %s0, 128, %s23, [#allocation3]
    $region5: #{tpu_custom_call.1} parent=1 // pred_fallthru
      _
    // Predicated region
    $region6: #{tpu_custom_call.1} parent=1 // pred_check
      _
    $region7: #{tpu_custom_call.1} parent=1 // pred_check_branch
      %27 = sbr.rel (0) target = $region9
    $region8: #{tpu_custom_call.1} parent=1 // pred_region
      %s29 = ssub.s32 512, 512
      %30 = vsyncadd [#allocation6], %s29
      %s31 = sshll.u32 [#allocation5], 4
      %s32 = int_to_ptr.vmem [resolvable:$true] %s31
      %37 = dma.hbm_to_vmem [thread:$0]  %s1, 512, %s32, [#allocation6], 128, 128, 8
    $region9: #{tpu_custom_call.1} parent=1 // pred_fallthru
      _
    // Predicated region
    $region10: #{tpu_custom_call.1} parent=1 // pred_check
      _
    $region11: #{tpu_custom_call.1} parent=1 // pred_check_branch
      %39 = sbr.rel (0) target = $region13
    $region12: #{tpu_custom_call.1} parent=1 // pred_region
      _
    $region13: #{tpu_custom_call.1} parent=1 // pred_fallthru
      _
    // Predicated region
    $region14: #{tpu_custom_call.1} parent=1 // pred_check
      _
    $region15: #{tpu_custom_call.1} parent=1 // pred_check_branch
      %41 = sbr.rel (0) target = $region17
    $region16: #{tpu_custom_call.1} parent=1 // pred_region
      %s43 = ssub.s32 8192, 8192
      %44 = vsyncadd [#allocation6], %s43
      %s45 = sshll.u32 [#allocation7], 4
      %s46 = int_to_ptr.vmem [resolvable:$true] %s45
      %51 = dma.hbm_to_vmem [thread:$0]  %s3, 8192, %s46, [#allocation6], 256, 256, 16
    $region17: #{tpu_custom_call.1} parent=1 // pred_fallthru
      _
    // Predicated region
    $region18: #{tpu_custom_call.1} parent=1 // pred_check
      _
    $region19: #{tpu_custom_call.1} parent=1 // pred_check_branch
      %53 = sbr.rel (0) target = $region21
    $region20: #{tpu_custom_call.1} parent=1 // pred_region
      _
    $region21: #{tpu_custom_call.1} parent=1 // pred_fallthru
      _
    // Predicated region
    $region22: #{tpu_custom_call.1} parent=1 // pred_check
      _
    $region23: #{tpu_custom_call.1} parent=1 // pred_check_branch
      %55 = sbr.rel (0) target = $region25
    $region24: #{tpu_custom_call.1} parent=1 // pred_region
      %s57 = ssub.s32 28672, 28672
      %58 = vsyncadd [#allocation9], %s57
      %s59 = sshll.u32 [#allocation8], 4
      %s60 = int_to_ptr.vmem [resolvable:$true] %s59
      %65 = dma.hbm_to_vmem [thread:$0]  %s5, 28672, %s60, [#allocation9], 448, 448, 28
    $region25: #{tpu_custom_call.1} parent=1 // pred_fallthru
      _
    // Predicated region
    $region26: #{tpu_custom_call.1} parent=1 // pred_check
      _
    $region27: #{tpu_custom_call.1} parent=1 // pred_check_branch
      %67 = sbr.rel (0) target = $region29
    $region28: #{tpu_custom_call.1} parent=1 // pred_region
      _
    $region29: #{tpu_custom_call.1} parent=1 // pred_fallthru
      _
    // Predicated region
    $region30: #{tpu_custom_call.1} parent=1 // pred_check
      _
    $region31: #{tpu_custom_call.1} parent=1 // pred_check_branch
      %69 = sbr.rel (0) target = $region33
    $region32: #{tpu_custom_call.1} parent=1 // pred_region
      %70 = dma.done [#allocation3], 128
    $region33: #{tpu_custom_call.1} parent=1 // pred_fallthru
      _
    // Predicated region
    $region34: #{tpu_custom_call.1} parent=1 // pred_check
      _
    $region35: #{tpu_custom_call.1} parent=1 // pred_check_branch
      %72 = sbr.rel (0) target = $region37
    $region36: #{tpu_custom_call.1} parent=1 // pred_region
      %73 = dma.done [#allocation6], 512
    $region37: #{tpu_custom_call.1} parent=1 // pred_fallthru
      _
    // Predicated region
    $region38: #{tpu_custom_call.1} parent=1 // pred_check
      _
    $region39: #{tpu_custom_call.1} parent=1 // pred_check_branch
      %75 = sbr.rel (0) target = $region41
    $region40: #{tpu_custom_call.1} parent=1 // pred_region
      %76 = dma.done [#allocation6], 8192
    $region41: #{tpu_custom_call.1} parent=1 // pred_fallthru
      _
    // Predicated region
    $region42: #{tpu_custom_call.1} parent=1 // pred_check
      _
    $region43: #{tpu_custom_call.1} parent=1 // pred_check_branch
      %78 = sbr.rel (0) target = $region45
    $region44: #{tpu_custom_call.1} parent=1 // pred_region
      %79 = dma.done [#allocation9], 28672
    $region45: #{tpu_custom_call.1} parent=1 // pred_fallthru
      _
    %v81 = vld [vmem:[#allocation2] sm:$0xff]
    %v82 = vpack.c.bf16 %v81, %v81
    %v83 = vld [vmem:[#allocation5] sm:$0xff]
    %v84 = vld [vmem:[#allocation5 + $0x8] sm:$0xff]
    %v85 = vld [vmem:[#allocation5 + $0x10] sm:$0xff]
    %v86 = vld [vmem:[#allocation5 + $0x18] sm:$0xff]
    %v87 = vld [vmem:[%s2] sm:$0x3]
    %v89 = vlaneseq
    %v90 = vshrl.u32 %v89, 7
    %v91 = vsub.s32 0, %v90
    %v92 = vrot.slane %v87, %v91
    %v93 = vlaneseq
    %v94 = vshrl.u32 %v93, 7
    %v95 = vsub.s32 1, %v94
    %v96 = vrot.slane %v87, %v95
    %v103 = vunpack.c.l.b16 %v83
    %v104 = vunpack.c.h.b16 %v83
    %v105 = vunpack.c.l.b16 %v84
    %v106 = vunpack.c.h.b16 %v84
    %v107 = vunpack.c.l.b16 %v85
    %v108 = vunpack.c.h.b16 %v85
    %v109 = vunpack.c.l.b16 %v86
    %v110 = vunpack.c.h.b16 %v86
    %v111 = vpack.c.b16 %v105, %v103
    %v112 = vpack.c.b16 %v106, %v104
    %v113 = vpack.c.b16 %v109, %v107
    %v114 = vpack.c.b16 %v110, %v108
    %vm119 = vcmask 261120
    %v121 = vsel %vm119, %v82, 0
    %123 = vmatprep.subr.bf16.mxu0 %v112
    %124 = vmatpush1.bf16.msra.mxu0 %v111
    %125 = vmatprep.subr.bf16.mxu0 %v114
    %126 = vmatpush1.bf16.msra.mxu0 %v113
    %127 = vmatprep.subr.bf16.mxu0 0
    %128 = vmatpush1.bf16.msra.mxu0 0
    %129 = vmatprep.subr.bf16.mxu0 0
    %130 = vmatpush1.bf16.msra.mxu0 0
    %131 = vmatprep.subr.bf16.mxu0 0
    %132 = vmatpush1.bf16.msra.mxu0 0
    %133 = vmatprep.subr.bf16.mxu0 0
    %134 = vmatpush1.bf16.msra.mxu0 0
    %135 = vmatprep.subr.bf16.mxu0 0
    %136 = vmatpush1.bf16.msra.mxu0 0
    %137 = vmatprep.subr.bf16.mxu0 0
    %138 = vmatpush1.bf16.msra.mxu0 0
    %139 = vmatprep.subr.bf16.mxu0 0
    %140 = vmatpush1.bf16.msra.mxu0 0
    %141 = vmatprep.subr.bf16.mxu0 0
    %142 = vmatpush1.bf16.msra.mxu0 0
    %143 = vmatprep.subr.bf16.mxu0 0
    %144 = vmatpush1.bf16.msra.mxu0 0
    %145 = vmatprep.subr.bf16.mxu0 0
    %146 = vmatpush1.bf16.msra.mxu0 0
    %147 = vmatprep.subr.bf16.mxu0 0
    %148 = vmatpush1.bf16.msra.mxu0 0
    %149 = vmatprep.subr.bf16.mxu0 0
    %150 = vmatpush1.bf16.msra.mxu0 0
    %151 = vmatprep.subr.bf16.mxu0 0
    %152 = vmatpush1.bf16.msra.mxu0 0
    %153 = vmatprep.subr.bf16.mxu0 0
    %154 = vmatpush1.bf16.msra.mxu0 0
    %155 = vmatprep.mubr.bf16.mxu0 0
    %156 = vmatmul.mubr.bf16.gmra.mrb[0].mxu0 %v121
    %v157 = vpop.f32.mrb[0].mxu0
    %v158 = vadd.f32 %v92, %v157
    %v159 = vpop.f32.mrb[0].mxu0
    %v160 = vadd.f32 %v96, %v159
    %v161 = vpop.f32.mrb[0].mxu0
    %v162 = vpop.f32.mrb[0].mxu0
    %163 = vdwg.mxu0
    %vm164 = vcmp.gt.f32.partialorder %v158, 0.0
    %vm165 = vcmp.gt.f32.partialorder %v160, 0.0
    %v166 = vmul.f32 %v158, 0.2
    %v167 = vmul.f32 %v160, 0.2
    %v168 = vsel %vm164, %v158, %v166
    %v169 = vsel %vm165, %v160, %v167
    %v170 = vpack.c.bf16 %v168, %v168
    %v171 = vpack.c.bf16 %v169, %v169
    %v172 = vld [vmem:[#allocation7] sm:$0xff]
    %v173 = vld [vmem:[#allocation7 + $0x8] sm:$0xff]
    %v174 = vld [vmem:[#allocation7 + $0x10] sm:$0xff]
    %v175 = vld [vmem:[#allocation7 + $0x18] sm:$0xff]
    %v176 = vld [vmem:[#allocation7 + $0x20] sm:$0xff]
    %v177 = vld [vmem:[#allocation7 + $0x28] sm:$0xff]
    %v178 = vld [vmem:[#allocation7 + $0x30] sm:$0xff]
    %v179 = vld [vmem:[#allocation7 + $0x38] sm:$0xff]
    %v180 = vld [vmem:[#allocation7 + $0x40] sm:$0xff]
    %v181 = vld [vmem:[#allocation7 + $0x48] sm:$0xff]
    %v182 = vld [vmem:[#allocation7 + $0x50] sm:$0xff]
    %v183 = vld [vmem:[#allocation7 + $0x58] sm:$0xff]
    %v184 = vld [vmem:[#allocation7 + $0x60] sm:$0xff]
    %v185 = vld [vmem:[#allocation7 + $0x68] sm:$0xff]
    %v186 = vld [vmem:[#allocation7 + $0x70] sm:$0xff]
    %v187 = vld [vmem:[#allocation7 + $0x78] sm:$0xff]
    %v188 = vld [vmem:[#allocation7 + $0x80] sm:$0xff]
    %v189 = vld [vmem:[#allocation7 + $0x88] sm:$0xff]
    %v190 = vld [vmem:[#allocation7 + $0x90] sm:$0xff]
    %v191 = vld [vmem:[#allocation7 + $0x98] sm:$0xff]
    %v192 = vld [vmem:[#allocation7 + $0xa0] sm:$0xff]
    %v193 = vld [vmem:[#allocation7 + $0xa8] sm:$0xff]
    %v194 = vld [vmem:[#allocation7 + $0xb0] sm:$0xff]
    %v195 = vld [vmem:[#allocation7 + $0xb8] sm:$0xff]
    %v196 = vld [vmem:[#allocation7 + $0xc0] sm:$0xff]
    %v197 = vld [vmem:[#allocation7 + $0xc8] sm:$0xff]
    %v198 = vld [vmem:[#allocation7 + $0xd0] sm:$0xff]
    %v199 = vld [vmem:[#allocation7 + $0xd8] sm:$0xff]
    %v200 = vld [vmem:[#allocation7 + $0xe0] sm:$0xff]
    %v201 = vld [vmem:[#allocation7 + $0xe8] sm:$0xff]
    %v202 = vld [vmem:[#allocation7 + $0xf0] sm:$0xff]
    %v203 = vld [vmem:[#allocation7 + $0xf8] sm:$0xff]
    %v204 = vld [vmem:[#allocation7 + $0x100] sm:$0xff]
    %v205 = vld [vmem:[#allocation7 + $0x108] sm:$0xff]
    %v206 = vld [vmem:[#allocation7 + $0x110] sm:$0xff]
    %v207 = vld [vmem:[#allocation7 + $0x118] sm:$0xff]
    %v208 = vld [vmem:[#allocation7 + $0x120] sm:$0xff]
    %v209 = vld [vmem:[#allocation7 + $0x128] sm:$0xff]
    %v210 = vld [vmem:[#allocation7 + $0x130] sm:$0xff]
    %v211 = vld [vmem:[#allocation7 + $0x138] sm:$0xff]
    %v212 = vld [vmem:[#allocation7 + $0x140] sm:$0xff]
    %v213 = vld [vmem:[#allocation7 + $0x148] sm:$0xff]
    %v214 = vld [vmem:[#allocation7 + $0x150] sm:$0xff]
    %v215 = vld [vmem:[#allocation7 + $0x158] sm:$0xff]
    %v216 = vld [vmem:[#allocation7 + $0x160] sm:$0xff]
    %v217 = vld [vmem:[#allocation7 + $0x168] sm:$0xff]
    %v218 = vld [vmem:[#allocation7 + $0x170] sm:$0xff]
    %v219 = vld [vmem:[#allocation7 + $0x178] sm:$0xff]
    %v220 = vld [vmem:[#allocation7 + $0x180] sm:$0xff]
    %v221 = vld [vmem:[#allocation7 + $0x188] sm:$0xff]
    %v222 = vld [vmem:[#allocation7 + $0x190] sm:$0xff]
    %v223 = vld [vmem:[#allocation7 + $0x198] sm:$0xff]
    %v224 = vld [vmem:[#allocation7 + $0x1a0] sm:$0xff]
    %v225 = vld [vmem:[#allocation7 + $0x1a8] sm:$0xff]
    %v226 = vld [vmem:[#allocation7 + $0x1b0] sm:$0xff]
    %v227 = vld [vmem:[#allocation7 + $0x1b8] sm:$0xff]
    %v228 = vld [vmem:[#allocation7 + $0x1c0] sm:$0xff]
    %v229 = vld [vmem:[#allocation7 + $0x1c8] sm:$0xff]
    %v230 = vld [vmem:[#allocation7 + $0x1d0] sm:$0xff]
    %v231 = vld [vmem:[#allocation7 + $0x1d8] sm:$0xff]
    %v232 = vld [vmem:[#allocation7 + $0x1e0] sm:$0xff]
    %v233 = vld [vmem:[#allocation7 + $0x1e8] sm:$0xff]
    %v234 = vld [vmem:[#allocation7 + $0x1f0] sm:$0xff]
    %v235 = vld [vmem:[#allocation7 + $0x1f8] sm:$0xff]
    %v236 = vld [vmem:[%s4] sm:$0xf]
    %v238 = vlaneseq
    %v239 = vshrl.u32 %v238, 7
    %v240 = vsub.s32 0, %v239
    %v241 = vrot.slane %v236, %v240
    %v242 = vlaneseq
    %v243 = vshrl.u32 %v242, 7
    %v244 = vsub.s32 1, %v243
    %v245 = vrot.slane %v236, %v244
    %v246 = vlaneseq
    %v247 = vshrl.u32 %v246, 7
    %v248 = vsub.s32 2, %v247
    %v249 = vrot.slane %v236, %v248
    %v250 = vlaneseq
    %v251 = vshrl.u32 %v250, 7
    %v252 = vsub.s32 3, %v251
    %v253 = vrot.slane %v236, %v252
    %v322 = vunpack.c.l.b16 %v172
    %v323 = vunpack.c.h.b16 %v172
    %v324 = vunpack.c.l.b16 %v173
    %v325 = vunpack.c.h.b16 %v173
    %v326 = vunpack.c.l.b16 %v174
    %v327 = vunpack.c.h.b16 %v174
    %v328 = vunpack.c.l.b16 %v175
    %v329 = vunpack.c.h.b16 %v175
    %v330 = vunpack.c.l.b16 %v176
    %v331 = vunpack.c.h.b16 %v176
    %v332 = vunpack.c.l.b16 %v177
    %v333 = vunpack.c.h.b16 %v177
    %v334 = vunpack.c.l.b16 %v178
    %v335 = vunpack.c.h.b16 %v178
    %v336 = vunpack.c.l.b16 %v179
    %v337 = vunpack.c.h.b16 %v179
    %v338 = vunpack.c.l.b16 %v180
    %v339 = vunpack.c.h.b16 %v180
    %v340 = vunpack.c.l.b16 %v181
    %v341 = vunpack.c.h.b16 %v181
    %v342 = vunpack.c.l.b16 %v182
    %v343 = vunpack.c.h.b16 %v182
    %v344 = vunpack.c.l.b16 %v183
    %v345 = vunpack.c.h.b16 %v183
    %v346 = vunpack.c.l.b16 %v184
    %v347 = vunpack.c.h.b16 %v184
    %v348 = vunpack.c.l.b16 %v185
    %v349 = vunpack.c.h.b16 %v185
    %v350 = vunpack.c.l.b16 %v186
    %v351 = vunpack.c.h.b16 %v186
    %v352 = vunpack.c.l.b16 %v187
    %v353 = vunpack.c.h.b16 %v187
    %v354 = vunpack.c.l.b16 %v188
    %v355 = vunpack.c.h.b16 %v188
    %v356 = vunpack.c.l.b16 %v189
    %v357 = vunpack.c.h.b16 %v189
    %v358 = vunpack.c.l.b16 %v190
    %v359 = vunpack.c.h.b16 %v190
    %v360 = vunpack.c.l.b16 %v191
    %v361 = vunpack.c.h.b16 %v191
    %v362 = vunpack.c.l.b16 %v192
    %v363 = vunpack.c.h.b16 %v192
    %v364 = vunpack.c.l.b16 %v193
    %v365 = vunpack.c.h.b16 %v193
    %v366 = vunpack.c.l.b16 %v194
    %v367 = vunpack.c.h.b16 %v194
    %v368 = vunpack.c.l.b16 %v195
    %v369 = vunpack.c.h.b16 %v195
    %v370 = vunpack.c.l.b16 %v196
    %v371 = vunpack.c.h.b16 %v196
    %v372 = vunpack.c.l.b16 %v197
    %v373 = vunpack.c.h.b16 %v197
    %v374 = vunpack.c.l.b16 %v198
    %v375 = vunpack.c.h.b16 %v198
    %v376 = vunpack.c.l.b16 %v199
    %v377 = vunpack.c.h.b16 %v199
    %v378 = vunpack.c.l.b16 %v200
    %v379 = vunpack.c.h.b16 %v200
    %v380 = vunpack.c.l.b16 %v201
    %v381 = vunpack.c.h.b16 %v201
    %v382 = vunpack.c.l.b16 %v202
    %v383 = vunpack.c.h.b16 %v202
    %v384 = vunpack.c.l.b16 %v203
    %v385 = vunpack.c.h.b16 %v203
    %v386 = vunpack.c.l.b16 %v204
    %v387 = vunpack.c.h.b16 %v204
    %v388 = vunpack.c.l.b16 %v205
    %v389 = vunpack.c.h.b16 %v205
    %v390 = vunpack.c.l.b16 %v206
    %v391 = vunpack.c.h.b16 %v206
    %v392 = vunpack.c.l.b16 %v207
    %v393 = vunpack.c.h.b16 %v207
    %v394 = vunpack.c.l.b16 %v208
    %v395 = vunpack.c.h.b16 %v208
    %v396 = vunpack.c.l.b16 %v209
    %v397 = vunpack.c.h.b16 %v209
    %v398 = vunpack.c.l.b16 %v210
    %v399 = vunpack.c.h.b16 %v210
    %v400 = vunpack.c.l.b16 %v211
    %v401 = vunpack.c.h.b16 %v211
    %v402 = vunpack.c.l.b16 %v212
    %v403 = vunpack.c.h.b16 %v212
    %v404 = vunpack.c.l.b16 %v213
    %v405 = vunpack.c.h.b16 %v213
    %v406 = vunpack.c.l.b16 %v214
    %v407 = vunpack.c.h.b16 %v214
    %v408 = vunpack.c.l.b16 %v215
    %v409 = vunpack.c.h.b16 %v215
    %v410 = vunpack.c.l.b16 %v216
    %v411 = vunpack.c.h.b16 %v216
    %v412 = vunpack.c.l.b16 %v217
    %v413 = vunpack.c.h.b16 %v217
    %v414 = vunpack.c.l.b16 %v218
    %v415 = vunpack.c.h.b16 %v218
    %v416 = vunpack.c.l.b16 %v219
    %v417 = vunpack.c.h.b16 %v219
    %v418 = vunpack.c.l.b16 %v220
    %v419 = vunpack.c.h.b16 %v220
    %v420 = vunpack.c.l.b16 %v221
    %v421 = vunpack.c.h.b16 %v221
    %v422 = vunpack.c.l.b16 %v222
    %v423 = vunpack.c.h.b16 %v222
    %v424 = vunpack.c.l.b16 %v223
    %v425 = vunpack.c.h.b16 %v223
    %v426 = vunpack.c.l.b16 %v224
    %v427 = vunpack.c.h.b16 %v224
    %v428 = vunpack.c.l.b16 %v225
    %v429 = vunpack.c.h.b16 %v225
    %v430 = vunpack.c.l.b16 %v226
    %v431 = vunpack.c.h.b16 %v226
    %v432 = vunpack.c.l.b16 %v227
    %v433 = vunpack.c.h.b16 %v227
    %v434 = vunpack.c.l.b16 %v228
    %v435 = vunpack.c.h.b16 %v228
    %v436 = vunpack.c.l.b16 %v229
    %v437 = vunpack.c.h.b16 %v229
    %v438 = vunpack.c.l.b16 %v230
    %v439 = vunpack.c.h.b16 %v230
    %v440 = vunpack.c.l.b16 %v231
    %v441 = vunpack.c.h.b16 %v231
    %v442 = vunpack.c.l.b16 %v232
    %v443 = vunpack.c.h.b16 %v232
    %v444 = vunpack.c.l.b16 %v233
    %v445 = vunpack.c.h.b16 %v233
    %v446 = vunpack.c.l.b16 %v234
    %v447 = vunpack.c.h.b16 %v234
    %v448 = vunpack.c.l.b16 %v235
    %v449 = vunpack.c.h.b16 %v235
    %v450 = vpack.c.b16 %v326, %v322
    %v451 = vpack.c.b16 %v327, %v323
    %v452 = vpack.c.b16 %v328, %v324
    %v453 = vpack.c.b16 %v329, %v325
    %v454 = vpack.c.b16 %v334, %v330
    %v455 = vpack.c.b16 %v335, %v331
    %v456 = vpack.c.b16 %v336, %v332
    %v457 = vpack.c.b16 %v337, %v333
    %v458 = vpack.c.b16 %v342, %v338
    %v459 = vpack.c.b16 %v343, %v339
    %v460 = vpack.c.b16 %v344, %v340
    %v461 = vpack.c.b16 %v345, %v341
    %v462 = vpack.c.b16 %v350, %v346
    %v463 = vpack.c.b16 %v351, %v347
    %v464 = vpack.c.b16 %v352, %v348
    %v465 = vpack.c.b16 %v353, %v349
    %v466 = vpack.c.b16 %v358, %v354
    %v467 = vpack.c.b16 %v359, %v355
    %v468 = vpack.c.b16 %v360, %v356
    %v469 = vpack.c.b16 %v361, %v357
    %v470 = vpack.c.b16 %v366, %v362
    %v471 = vpack.c.b16 %v367, %v363
    %v472 = vpack.c.b16 %v368, %v364
    %v473 = vpack.c.b16 %v369, %v365
    %v474 = vpack.c.b16 %v374, %v370
    %v475 = vpack.c.b16 %v375, %v371
    %v476 = vpack.c.b16 %v376, %v372
    %v477 = vpack.c.b16 %v377, %v373
    %v478 = vpack.c.b16 %v382, %v378
    %v479 = vpack.c.b16 %v383, %v379
    %v480 = vpack.c.b16 %v384, %v380
    %v481 = vpack.c.b16 %v385, %v381
    %v482 = vpack.c.b16 %v390, %v386
    %v483 = vpack.c.b16 %v391, %v387
    %v484 = vpack.c.b16 %v392, %v388
    %v485 = vpack.c.b16 %v393, %v389
    %v486 = vpack.c.b16 %v398, %v394
    %v487 = vpack.c.b16 %v399, %v395
    %v488 = vpack.c.b16 %v400, %v396
    %v489 = vpack.c.b16 %v401, %v397
    %v490 = vpack.c.b16 %v406, %v402
    %v491 = vpack.c.b16 %v407, %v403
    %v492 = vpack.c.b16 %v408, %v404
    %v493 = vpack.c.b16 %v409, %v405
    %v494 = vpack.c.b16 %v414, %v410
    %v495 = vpack.c.b16 %v415, %v411
    %v496 = vpack.c.b16 %v416, %v412
    %v497 = vpack.c.b16 %v417, %v413
    %v498 = vpack.c.b16 %v422, %v418
    %v499 = vpack.c.b16 %v423, %v419
    %v500 = vpack.c.b16 %v424, %v420
    %v501 = vpack.c.b16 %v425, %v421
    %v502 = vpack.c.b16 %v430, %v426
    %v503 = vpack.c.b16 %v431, %v427
    %v504 = vpack.c.b16 %v432, %v428
    %v505 = vpack.c.b16 %v433, %v429
    %v506 = vpack.c.b16 %v438, %v434
    %v507 = vpack.c.b16 %v439, %v435
    %v508 = vpack.c.b16 %v440, %v436
    %v509 = vpack.c.b16 %v441, %v437
    %v510 = vpack.c.b16 %v446, %v442
    %v511 = vpack.c.b16 %v447, %v443
    %v512 = vpack.c.b16 %v448, %v444
    %v513 = vpack.c.b16 %v449, %v445
    %578 = vmatprep.subr.bf16.mxu0 %v451
    %579 = vmatpush1.bf16.msra.mxu0 %v450
    %580 = vmatprep.subr.bf16.mxu0 %v455
    %581 = vmatpush1.bf16.msra.mxu0 %v454
    %582 = vmatprep.subr.bf16.mxu0 %v459
    %583 = vmatpush1.bf16.msra.mxu0 %v458
    %584 = vmatprep.subr.bf16.mxu0 %v463
    %585 = vmatpush1.bf16.msra.mxu0 %v462
    %586 = vmatprep.subr.bf16.mxu0 %v467
    %587 = vmatpush1.bf16.msra.mxu0 %v466
    %588 = vmatprep.subr.bf16.mxu0 %v471
    %589 = vmatpush1.bf16.msra.mxu0 %v470
    %590 = vmatprep.subr.bf16.mxu0 %v475
    %591 = vmatpush1.bf16.msra.mxu0 %v474
    %592 = vmatprep.subr.bf16.mxu0 %v479
    %593 = vmatpush1.bf16.msra.mxu0 %v478
    %594 = vmatprep.subr.bf16.mxu0 %v483
    %595 = vmatpush1.bf16.msra.mxu0 %v482
    %596 = vmatprep.subr.bf16.mxu0 %v487
    %597 = vmatpush1.bf16.msra.mxu0 %v486
    %598 = vmatprep.subr.bf16.mxu0 %v491
    %599 = vmatpush1.bf16.msra.mxu0 %v490
    %600 = vmatprep.subr.bf16.mxu0 %v495
    %601 = vmatpush1.bf16.msra.mxu0 %v494
    %602 = vmatprep.subr.bf16.mxu0 %v499
    %603 = vmatpush1.bf16.msra.mxu0 %v498
    %604 = vmatprep.subr.bf16.mxu0 %v503
    %605 = vmatpush1.bf16.msra.mxu0 %v502
    %606 = vmatprep.subr.bf16.mxu0 %v507
    %607 = vmatpush1.bf16.msra.mxu0 %v506
    %608 = vmatprep.subr.bf16.mxu0 %v511
    %609 = vmatpush1.bf16.msra.mxu0 %v510
    %610 = vmatprep.mubr.bf16.mxu0 %v171
    %611 = vmatmul.mubr.bf16.gmra.mrb[0].mxu0 %v170
    %v612 = vpop.f32.mrb[0].mxu0
    %v613 = vadd.f32 %v241, %v612
    %v614 = vpop.f32.mrb[0].mxu0
    %v615 = vadd.f32 %v245, %v614
    %v616 = vpop.f32.mrb[0].mxu0
    %v617 = vpop.f32.mrb[0].mxu0
    %618 = vdwg.mxu0
    %619 = vmatprep.subr.bf16.mxu0 %v453
    %620 = vmatpush1.bf16.msra.mxu0 %v452
    %621 = vmatprep.subr.bf16.mxu0 %v457
    %622 = vmatpush1.bf16.msra.mxu0 %v456
    %623 = vmatprep.subr.bf16.mxu0 %v461
    %624 = vmatpush1.bf16.msra.mxu0 %v460
    %625 = vmatprep.subr.bf16.mxu0 %v465
    %626 = vmatpush1.bf16.msra.mxu0 %v464
    %627 = vmatprep.subr.bf16.mxu0 %v469
    %628 = vmatpush1.bf16.msra.mxu0 %v468
    %629 = vmatprep.subr.bf16.mxu0 %v473
    %630 = vmatpush1.bf16.msra.mxu0 %v472
    %631 = vmatprep.subr.bf16.mxu0 %v477
    %632 = vmatpush1.bf16.msra.mxu0 %v476
    %633 = vmatprep.subr.bf16.mxu0 %v481
    %634 = vmatpush1.bf16.msra.mxu0 %v480
    %635 = vmatprep.subr.bf16.mxu0 %v485
    %636 = vmatpush1.bf16.msra.mxu0 %v484
    %637 = vmatprep.subr.bf16.mxu0 %v489
    %638 = vmatpush1.bf16.msra.mxu0 %v488
    %639 = vmatprep.subr.bf16.mxu0 %v493
    %640 = vmatpush1.bf16.msra.mxu0 %v492
    %641 = vmatprep.subr.bf16.mxu0 %v497
    %642 = vmatpush1.bf16.msra.mxu0 %v496
    %643 = vmatprep.subr.bf16.mxu0 %v501
    %644 = vmatpush1.bf16.msra.mxu0 %v500
    %645 = vmatprep.subr.bf16.mxu0 %v505
    %646 = vmatpush1.bf16.msra.mxu0 %v504
    %647 = vmatprep.subr.bf16.mxu0 %v509
    %648 = vmatpush1.bf16.msra.mxu0 %v508
    %649 = vmatprep.subr.bf16.mxu0 %v513
    %650 = vmatpush1.bf16.msra.mxu0 %v512
    %651 = vmatprep.mubr.bf16.mxu0 %v171
    %652 = vmatmul.mubr.bf16.gmra.mrb[0].mxu0 %v170
    %v653 = vpop.f32.mrb[0].mxu0
    %v654 = vadd.f32 %v249, %v653
    %v655 = vpop.f32.mrb[0].mxu0
    %v656 = vadd.f32 %v253, %v655
    %v657 = vpop.f32.mrb[0].mxu0
    %v658 = vpop.f32.mrb[0].mxu0
    %659 = vdwg.mxu0
    %vm660 = vcmp.gt.f32.partialorder %v613, 0.0
    %vm661 = vcmp.gt.f32.partialorder %v615, 0.0
    %vm662 = vcmp.gt.f32.partialorder %v654, 0.0
    %vm663 = vcmp.gt.f32.partialorder %v656, 0.0
    %v664 = vmul.f32 %v613, 0.2
    %v665 = vmul.f32 %v615, 0.2
    %v666 = vmul.f32 %v654, 0.2
    %v667 = vmul.f32 %v656, 0.2
    %v668 = vsel %vm660, %v613, %v664
    %v669 = vsel %vm661, %v615, %v665
    %v670 = vsel %vm662, %v654, %v666
    %v671 = vsel %vm663, %v656, %v667
    %v672 = vpack.c.bf16 %v668, %v668
    %v673 = vpack.c.bf16 %v669, %v669
    %v674 = vpack.c.bf16 %v670, %v670
    %v675 = vpack.c.bf16 %v671, %v671
    %v676 = vld [vmem:[#allocation8] sm:$0xff]
    %v677 = vld [vmem:[#allocation8 + $0x8] sm:$0xff]
    %v678 = vld [vmem:[#allocation8 + $0x10] sm:$0xff]
    %v679 = vld [vmem:[#allocation8 + $0x18] sm:$0xf]
    %v680 = vld [vmem:[#allocation8 + $0x1c] sm:$0xff]
    %v681 = vld [vmem:[#allocation8 + $0x24] sm:$0xff]
    %v682 = vld [vmem:[#allocation8 + $0x2c] sm:$0xff]
    %v683 = vld [vmem:[#allocation8 + $0x34] sm:$0xf]
    %v684 = vld [vmem:[#allocation8 + $0x38] sm:$0xff]
    %v685 = vld [vmem:[#allocation8 + $0x40] sm:$0xff]
    %v686 = vld [vmem:[#allocation8 + $0x48] sm:$0xff]
    %v687 = vld [vmem:[#allocation8 + $0x50] sm:$0xf]
    %v688 = vld [vmem:[#allocation8 + $0x54] sm:$0xff]
    %v689 = vld [vmem:[#allocation8 + $0x5c] sm:$0xff]
    %v690 = vld [vmem:[#allocation8 + $0x64] sm:$0xff]
    %v691 = vld [vmem:[#allocation8 + $0x6c] sm:$0xf]
    %v692 = vld [vmem:[#allocation8 + $0x70] sm:$0xff]
    %v693 = vld [vmem:[#allocation8 + $0x78] sm:$0xff]
    %v694 = vld [vmem:[#allocation8 + $0x80] sm:$0xff]
    %v695 = vld [vmem:[#allocation8 + $0x88] sm:$0xf]
    %v696 = vld [vmem:[#allocation8 + $0x8c] sm:$0xff]
    %v697 = vld [vmem:[#allocation8 + $0x94] sm:$0xff]
    %v698 = vld [vmem:[#allocation8 + $0x9c] sm:$0xff]
    %v699 = vld [vmem:[#allocation8 + $0xa4] sm:$0xf]
    %v700 = vld [vmem:[#allocation8 + $0xa8] sm:$0xff]
    %v701 = vld [vmem:[#allocation8 + $0xb0] sm:$0xff]
    %v702 = vld [vmem:[#allocation8 + $0xb8] sm:$0xff]
    %v703 = vld [vmem:[#allocation8 + $0xc0] sm:$0xf]
    %v704 = vld [vmem:[#allocation8 + $0xc4] sm:$0xff]
    %v705 = vld [vmem:[#allocation8 + $0xcc] sm:$0xff]
    %v706 = vld [vmem:[#allocation8 + $0xd4] sm:$0xff]
    %v707 = vld [vmem:[#allocation8 + $0xdc] sm:$0xf]
    %v708 = vld [vmem:[#allocation8 + $0xe0] sm:$0xff]
    %v709 = vld [vmem:[#allocation8 + $0xe8] sm:$0xff]
    %v710 = vld [vmem:[#allocation8 + $0xf0] sm:$0xff]
    %v711 = vld [vmem:[#allocation8 + $0xf8] sm:$0xf]
    %v712 = vld [vmem:[#allocation8 + $0xfc] sm:$0xff]
    %v713 = vld [vmem:[#allocation8 + $0x104] sm:$0xff]
    %v714 = vld [vmem:[#allocation8 + $0x10c] sm:$0xff]
    %v715 = vld [vmem:[#allocation8 + $0x114] sm:$0xf]
    %v716 = vld [vmem:[#allocation8 + $0x118] sm:$0xff]
    %v717 = vld [vmem:[#allocation8 + $0x120] sm:$0xff]
    %v718 = vld [vmem:[#allocation8 + $0x128] sm:$0xff]
    %v719 = vld [vmem:[#allocation8 + $0x130] sm:$0xf]
    %v720 = vld [vmem:[#allocation8 + $0x134] sm:$0xff]
    %v721 = vld [vmem:[#allocation8 + $0x13c] sm:$0xff]
    %v722 = vld [vmem:[#allocation8 + $0x144] sm:$0xff]
    %v723 = vld [vmem:[#allocation8 + $0x14c] sm:$0xf]
    %v724 = vld [vmem:[#allocation8 + $0x150] sm:$0xff]
    %v725 = vld [vmem:[#allocation8 + $0x158] sm:$0xff]
    %v726 = vld [vmem:[#allocation8 + $0x160] sm:$0xff]
    %v727 = vld [vmem:[#allocation8 + $0x168] sm:$0xf]
    %v728 = vld [vmem:[#allocation8 + $0x16c] sm:$0xff]
    %v729 = vld [vmem:[#allocation8 + $0x174] sm:$0xff]
    %v730 = vld [vmem:[#allocation8 + $0x17c] sm:$0xff]
    %v731 = vld [vmem:[#allocation8 + $0x184] sm:$0xf]
    %v732 = vld [vmem:[#allocation8 + $0x188] sm:$0xff]
    %v733 = vld [vmem:[#allocation8 + $0x190] sm:$0xff]
    %v734 = vld [vmem:[#allocation8 + $0x198] sm:$0xff]
    %v735 = vld [vmem:[#allocation8 + $0x1a0] sm:$0xf]
    %v736 = vld [vmem:[#allocation8 + $0x1a4] sm:$0xff]
    %v737 = vld [vmem:[#allocation8 + $0x1ac] sm:$0xff]
    %v738 = vld [vmem:[#allocation8 + $0x1b4] sm:$0xff]
    %v739 = vld [vmem:[#allocation8 + $0x1bc] sm:$0xf]
    %v740 = vld [vmem:[#allocation8 + $0x1c0] sm:$0xff]
    %v741 = vld [vmem:[#allocation8 + $0x1c8] sm:$0xff]
    %v742 = vld [vmem:[#allocation8 + $0x1d0] sm:$0xff]
    %v743 = vld [vmem:[#allocation8 + $0x1d8] sm:$0xf]
    %v744 = vld [vmem:[#allocation8 + $0x1dc] sm:$0xff]
    %v745 = vld [vmem:[#allocation8 + $0x1e4] sm:$0xff]
    %v746 = vld [vmem:[#allocation8 + $0x1ec] sm:$0xff]
    %v747 = vld [vmem:[#allocation8 + $0x1f4] sm:$0xf]
    %v748 = vld [vmem:[#allocation8 + $0x1f8] sm:$0xff]
    %v749 = vld [vmem:[#allocation8 + $0x200] sm:$0xff]
    %v750 = vld [vmem:[#allocation8 + $0x208] sm:$0xff]
    %v751 = vld [vmem:[#allocation8 + $0x210] sm:$0xf]
    %v752 = vld [vmem:[#allocation8 + $0x214] sm:$0xff]
    %v753 = vld [vmem:[#allocation8 + $0x21c] sm:$0xff]
    %v754 = vld [vmem:[#allocation8 + $0x224] sm:$0xff]
    %v755 = vld [vmem:[#allocation8 + $0x22c] sm:$0xf]
    %v756 = vld [vmem:[#allocation8 + $0x230] sm:$0xff]
    %v757 = vld [vmem:[#allocation8 + $0x238] sm:$0xff]
    %v758 = vld [vmem:[#allocation8 + $0x240] sm:$0xff]
    %v759 = vld [vmem:[#allocation8 + $0x248] sm:$0xf]
    %v760 = vld [vmem:[#allocation8 + $0x24c] sm:$0xff]
    %v761 = vld [vmem:[#allocation8 + $0x254] sm:$0xff]
    %v762 = vld [vmem:[#allocation8 + $0x25c] sm:$0xff]
    %v763 = vld [vmem:[#allocation8 + $0x264] sm:$0xf]
    %v764 = vld [vmem:[#allocation8 + $0x268] sm:$0xff]
    %v765 = vld [vmem:[#allocation8 + $0x270] sm:$0xff]
    %v766 = vld [vmem:[#allocation8 + $0x278] sm:$0xff]
    %v767 = vld [vmem:[#allocation8 + $0x280] sm:$0xf]
    %v768 = vld [vmem:[#allocation8 + $0x284] sm:$0xff]
    %v769 = vld [vmem:[#allocation8 + $0x28c] sm:$0xff]
    %v770 = vld [vmem:[#allocation8 + $0x294] sm:$0xff]
    %v771 = vld [vmem:[#allocation8 + $0x29c] sm:$0xf]
    %v772 = vld [vmem:[#allocation8 + $0x2a0] sm:$0xff]
    %v773 = vld [vmem:[#allocation8 + $0x2a8] sm:$0xff]
    %v774 = vld [vmem:[#allocation8 + $0x2b0] sm:$0xff]
    %v775 = vld [vmem:[#allocation8 + $0x2b8] sm:$0xf]
    %v776 = vld [vmem:[#allocation8 + $0x2bc] sm:$0xff]
    %v777 = vld [vmem:[#allocation8 + $0x2c4] sm:$0xff]
    %v778 = vld [vmem:[#allocation8 + $0x2cc] sm:$0xff]
    %v779 = vld [vmem:[#allocation8 + $0x2d4] sm:$0xf]
    %v780 = vld [vmem:[#allocation8 + $0x2d8] sm:$0xff]
    %v781 = vld [vmem:[#allocation8 + $0x2e0] sm:$0xff]
    %v782 = vld [vmem:[#allocation8 + $0x2e8] sm:$0xff]
    %v783 = vld [vmem:[#allocation8 + $0x2f0] sm:$0xf]
    %v784 = vld [vmem:[#allocation8 + $0x2f4] sm:$0xff]
    %v785 = vld [vmem:[#allocation8 + $0x2fc] sm:$0xff]
    %v786 = vld [vmem:[#allocation8 + $0x304] sm:$0xff]
    %v787 = vld [vmem:[#allocation8 + $0x30c] sm:$0xf]
    %v788 = vld [vmem:[#allocation8 + $0x310] sm:$0xff]
    %v789 = vld [vmem:[#allocation8 + $0x318] sm:$0xff]
    %v790 = vld [vmem:[#allocation8 + $0x320] sm:$0xff]
    %v791 = vld [vmem:[#allocation8 + $0x328] sm:$0xf]
    %v792 = vld [vmem:[#allocation8 + $0x32c] sm:$0xff]
    %v793 = vld [vmem:[#allocation8 + $0x334] sm:$0xff]
    %v794 = vld [vmem:[#allocation8 + $0x33c] sm:$0xff]
    %v795 = vld [vmem:[#allocation8 + $0x344] sm:$0xf]
    %v796 = vld [vmem:[#allocation8 + $0x348] sm:$0xff]
    %v797 = vld [vmem:[#allocation8 + $0x350] sm:$0xff]
    %v798 = vld [vmem:[#allocation8 + $0x358] sm:$0xff]
    %v799 = vld [vmem:[#allocation8 + $0x360] sm:$0xf]
    %v800 = vld [vmem:[#allocation8 + $0x364] sm:$0xff]
    %v801 = vld [vmem:[#allocation8 + $0x36c] sm:$0xff]
    %v802 = vld [vmem:[#allocation8 + $0x374] sm:$0xff]
    %v803 = vld [vmem:[#allocation8 + $0x37c] sm:$0xf]
    %v804 = vld [vmem:[#allocation8 + $0x380] sm:$0xff]
    %v805 = vld [vmem:[#allocation8 + $0x388] sm:$0xff]
    %v806 = vld [vmem:[#allocation8 + $0x390] sm:$0xff]
    %v807 = vld [vmem:[#allocation8 + $0x398] sm:$0xf]
    %v808 = vld [vmem:[#allocation8 + $0x39c] sm:$0xff]
    %v809 = vld [vmem:[#allocation8 + $0x3a4] sm:$0xff]
    %v810 = vld [vmem:[#allocation8 + $0x3ac] sm:$0xff]
    %v811 = vld [vmem:[#allocation8 + $0x3b4] sm:$0xf]
    %v812 = vld [vmem:[#allocation8 + $0x3b8] sm:$0xff]
    %v813 = vld [vmem:[#allocation8 + $0x3c0] sm:$0xff]
    %v814 = vld [vmem:[#allocation8 + $0x3c8] sm:$0xff]
    %v815 = vld [vmem:[#allocation8 + $0x3d0] sm:$0xf]
    %v816 = vld [vmem:[#allocation8 + $0x3d4] sm:$0xff]
    %v817 = vld [vmem:[#allocation8 + $0x3dc] sm:$0xff]
    %v818 = vld [vmem:[#allocation8 + $0x3e4] sm:$0xff]
    %v819 = vld [vmem:[#allocation8 + $0x3ec] sm:$0xf]
    %v820 = vld [vmem:[#allocation8 + $0x3f0] sm:$0xff]
    %v821 = vld [vmem:[#allocation8 + $0x3f8] sm:$0xff]
    %v822 = vld [vmem:[#allocation8 + $0x400] sm:$0xff]
    %v823 = vld [vmem:[#allocation8 + $0x408] sm:$0xf]
    %v824 = vld [vmem:[#allocation8 + $0x40c] sm:$0xff]
    %v825 = vld [vmem:[#allocation8 + $0x414] sm:$0xff]
    %v826 = vld [vmem:[#allocation8 + $0x41c] sm:$0xff]
    %v827 = vld [vmem:[#allocation8 + $0x424] sm:$0xf]
    %v828 = vld [vmem:[#allocation8 + $0x428] sm:$0xff]
    %v829 = vld [vmem:[#allocation8 + $0x430] sm:$0xff]
    %v830 = vld [vmem:[#allocation8 + $0x438] sm:$0xff]
    %v831 = vld [vmem:[#allocation8 + $0x440] sm:$0xf]
    %v832 = vld [vmem:[#allocation8 + $0x444] sm:$0xff]
    %v833 = vld [vmem:[#allocation8 + $0x44c] sm:$0xff]
    %v834 = vld [vmem:[#allocation8 + $0x454] sm:$0xff]
    %v835 = vld [vmem:[#allocation8 + $0x45c] sm:$0xf]
    %v836 = vld [vmem:[#allocation8 + $0x460] sm:$0xff]
    %v837 = vld [vmem:[#allocation8 + $0x468] sm:$0xff]
    %v838 = vld [vmem:[#allocation8 + $0x470] sm:$0xff]
    %v839 = vld [vmem:[#allocation8 + $0x478] sm:$0xf]
    %v840 = vld [vmem:[#allocation8 + $0x47c] sm:$0xff]
    %v841 = vld [vmem:[#allocation8 + $0x484] sm:$0xff]
    %v842 = vld [vmem:[#allocation8 + $0x48c] sm:$0xff]
    %v843 = vld [vmem:[#allocation8 + $0x494] sm:$0xf]
    %v844 = vld [vmem:[#allocation8 + $0x498] sm:$0xff]
    %v845 = vld [vmem:[#allocation8 + $0x4a0] sm:$0xff]
    %v846 = vld [vmem:[#allocation8 + $0x4a8] sm:$0xff]
    %v847 = vld [vmem:[#allocation8 + $0x4b0] sm:$0xf]
    %v848 = vld [vmem:[#allocation8 + $0x4b4] sm:$0xff]
    %v849 = vld [vmem:[#allocation8 + $0x4bc] sm:$0xff]
    %v850 = vld [vmem:[#allocation8 + $0x4c4] sm:$0xff]
    %v851 = vld [vmem:[#allocation8 + $0x4cc] sm:$0xf]
    %v852 = vld [vmem:[#allocation8 + $0x4d0] sm:$0xff]
    %v853 = vld [vmem:[#allocation8 + $0x4d8] sm:$0xff]
    %v854 = vld [vmem:[#allocation8 + $0x4e0] sm:$0xff]
    %v855 = vld [vmem:[#allocation8 + $0x4e8] sm:$0xf]
    %v856 = vld [vmem:[#allocation8 + $0x4ec] sm:$0xff]
    %v857 = vld [vmem:[#allocation8 + $0x4f4] sm:$0xff]
    %v858 = vld [vmem:[#allocation8 + $0x4fc] sm:$0xff]
    %v859 = vld [vmem:[#allocation8 + $0x504] sm:$0xf]
    %v860 = vld [vmem:[#allocation8 + $0x508] sm:$0xff]
    %v861 = vld [vmem:[#allocation8 + $0x510] sm:$0xff]
    %v862 = vld [vmem:[#allocation8 + $0x518] sm:$0xff]
    %v863 = vld [vmem:[#allocation8 + $0x520] sm:$0xf]
    %v864 = vld [vmem:[#allocation8 + $0x524] sm:$0xff]
    %v865 = vld [vmem:[#allocation8 + $0x52c] sm:$0xff]
    %v866 = vld [vmem:[#allocation8 + $0x534] sm:$0xff]
    %v867 = vld [vmem:[#allocation8 + $0x53c] sm:$0xf]
    %v868 = vld [vmem:[#allocation8 + $0x540] sm:$0xff]
    %v869 = vld [vmem:[#allocation8 + $0x548] sm:$0xff]
    %v870 = vld [vmem:[#allocation8 + $0x550] sm:$0xff]
    %v871 = vld [vmem:[#allocation8 + $0x558] sm:$0xf]
    %v872 = vld [vmem:[#allocation8 + $0x55c] sm:$0xff]
    %v873 = vld [vmem:[#allocation8 + $0x564] sm:$0xff]
    %v874 = vld [vmem:[#allocation8 + $0x56c] sm:$0xff]
    %v875 = vld [vmem:[#allocation8 + $0x574] sm:$0xf]
    %v876 = vld [vmem:[#allocation8 + $0x578] sm:$0xff]
    %v877 = vld [vmem:[#allocation8 + $0x580] sm:$0xff]
    %v878 = vld [vmem:[#allocation8 + $0x588] sm:$0xff]
    %v879 = vld [vmem:[#allocation8 + $0x590] sm:$0xf]
    %v880 = vld [vmem:[#allocation8 + $0x594] sm:$0xff]
    %v881 = vld [vmem:[#allocation8 + $0x59c] sm:$0xff]
    %v882 = vld [vmem:[#allocation8 + $0x5a4] sm:$0xff]
    %v883 = vld [vmem:[#allocation8 + $0x5ac] sm:$0xf]
    %v884 = vld [vmem:[#allocation8 + $0x5b0] sm:$0xff]
    %v885 = vld [vmem:[#allocation8 + $0x5b8] sm:$0xff]
    %v886 = vld [vmem:[#allocation8 + $0x5c0] sm:$0xff]
    %v887 = vld [vmem:[#allocation8 + $0x5c8] sm:$0xf]
    %v888 = vld [vmem:[#allocation8 + $0x5cc] sm:$0xff]
    %v889 = vld [vmem:[#allocation8 + $0x5d4] sm:$0xff]
    %v890 = vld [vmem:[#allocation8 + $0x5dc] sm:$0xff]
    %v891 = vld [vmem:[#allocation8 + $0x5e4] sm:$0xf]
    %v892 = vld [vmem:[#allocation8 + $0x5e8] sm:$0xff]
    %v893 = vld [vmem:[#allocation8 + $0x5f0] sm:$0xff]
    %v894 = vld [vmem:[#allocation8 + $0x5f8] sm:$0xff]
    %v895 = vld [vmem:[#allocation8 + $0x600] sm:$0xf]
    %v896 = vld [vmem:[#allocation8 + $0x604] sm:$0xff]
    %v897 = vld [vmem:[#allocation8 + $0x60c] sm:$0xff]
    %v898 = vld [vmem:[#allocation8 + $0x614] sm:$0xff]
    %v899 = vld [vmem:[#allocation8 + $0x61c] sm:$0xf]
    %v900 = vld [vmem:[#allocation8 + $0x620] sm:$0xff]
    %v901 = vld [vmem:[#allocation8 + $0x628] sm:$0xff]
    %v902 = vld [vmem:[#allocation8 + $0x630] sm:$0xff]
    %v903 = vld [vmem:[#allocation8 + $0x638] sm:$0xf]
    %v904 = vld [vmem:[#allocation8 + $0x63c] sm:$0xff]
    %v905 = vld [vmem:[#allocation8 + $0x644] sm:$0xff]
    %v906 = vld [vmem:[#allocation8 + $0x64c] sm:$0xff]
    %v907 = vld [vmem:[#allocation8 + $0x654] sm:$0xf]
    %v908 = vld [vmem:[#allocation8 + $0x658] sm:$0xff]
    %v909 = vld [vmem:[#allocation8 + $0x660] sm:$0xff]
    %v910 = vld [vmem:[#allocation8 + $0x668] sm:$0xff]
    %v911 = vld [vmem:[#allocation8 + $0x670] sm:$0xf]
    %v912 = vld [vmem:[#allocation8 + $0x674] sm:$0xff]
    %v913 = vld [vmem:[#allocation8 + $0x67c] sm:$0xff]
    %v914 = vld [vmem:[#allocation8 + $0x684] sm:$0xff]
    %v915 = vld [vmem:[#allocation8 + $0x68c] sm:$0xf]
    %v916 = vld [vmem:[#allocation8 + $0x690] sm:$0xff]
    %v917 = vld [vmem:[#allocation8 + $0x698] sm:$0xff]
    %v918 = vld [vmem:[#allocation8 + $0x6a0] sm:$0xff]
    %v919 = vld [vmem:[#allocation8 + $0x6a8] sm:$0xf]
    %v920 = vld [vmem:[#allocation8 + $0x6ac] sm:$0xff]
    %v921 = vld [vmem:[#allocation8 + $0x6b4] sm:$0xff]
    %v922 = vld [vmem:[#allocation8 + $0x6bc] sm:$0xff]
    %v923 = vld [vmem:[#allocation8 + $0x6c4] sm:$0xf]
    %v924 = vld [vmem:[#allocation8 + $0x6c8] sm:$0xff]
    %v925 = vld [vmem:[#allocation8 + $0x6d0] sm:$0xff]
    %v926 = vld [vmem:[#allocation8 + $0x6d8] sm:$0xff]
    %v927 = vld [vmem:[#allocation8 + $0x6e0] sm:$0xf]
    %v928 = vld [vmem:[#allocation8 + $0x6e4] sm:$0xff]
    %v929 = vld [vmem:[#allocation8 + $0x6ec] sm:$0xff]
    %v930 = vld [vmem:[#allocation8 + $0x6f4] sm:$0xff]
    %v931 = vld [vmem:[#allocation8 + $0x6fc] sm:$0xf]
    %v932 = vld [vmem:[%s6] sm:$0xff]
    %v934 = vlaneseq
    %v935 = vshrl.u32 %v934, 7
    %v936 = vsub.s32 0, %v935
    %v937 = vrot.slane %v932, %v936
    %v938 = vlaneseq
    %v939 = vshrl.u32 %v938, 7
    %v940 = vsub.s32 1, %v939
    %v941 = vrot.slane %v932, %v940
    %v942 = vlaneseq
    %v943 = vshrl.u32 %v942, 7
    %v944 = vsub.s32 2, %v943
    %v945 = vrot.slane %v932, %v944
    %v946 = vlaneseq
    %v947 = vshrl.u32 %v946, 7
    %v948 = vsub.s32 3, %v947
    %v949 = vrot.slane %v932, %v948
    %v950 = vlaneseq
    %v951 = vshrl.u32 %v950, 7
    %v952 = vsub.s32 4, %v951
    %v953 = vrot.slane %v932, %v952
    %v954 = vlaneseq
    %v955 = vshrl.u32 %v954, 7
    %v956 = vsub.s32 5, %v955
    %v957 = vrot.slane %v932, %v956
    %v958 = vlaneseq
    %v959 = vshrl.u32 %v958, 7
    %v960 = vsub.s32 6, %v959
    %v961 = vrot.slane %v932, %v960
    %v1225 = vunpack.c.l.b16 %v676
    %v1226 = vunpack.c.h.b16 %v676
    %v1227 = vunpack.c.l.b16 %v677
    %v1228 = vunpack.c.h.b16 %v677
    %v1229 = vunpack.c.l.b16 %v678
    %v1230 = vunpack.c.h.b16 %v678
    %v1231 = vunpack.c.l.b16 %v679
    %v1232 = vunpack.c.l.b16 %v680
    %v1233 = vunpack.c.h.b16 %v680
    %v1234 = vunpack.c.l.b16 %v681
    %v1235 = vunpack.c.h.b16 %v681
    %v1236 = vunpack.c.l.b16 %v682
    %v1237 = vunpack.c.h.b16 %v682
    %v1238 = vunpack.c.l.b16 %v683
    %v1239 = vunpack.c.l.b16 %v684
    %v1240 = vunpack.c.h.b16 %v684
    %v1241 = vunpack.c.l.b16 %v685
    %v1242 = vunpack.c.h.b16 %v685
    %v1243 = vunpack.c.l.b16 %v686
    %v1244 = vunpack.c.h.b16 %v686
    %v1245 = vunpack.c.l.b16 %v687
    %v1246 = vunpack.c.l.b16 %v688
    %v1247 = vunpack.c.h.b16 %v688
    %v1248 = vunpack.c.l.b16 %v689
    %v1249 = vunpack.c.h.b16 %v689
    %v1250 = vunpack.c.l.b16 %v690
    %v1251 = vunpack.c.h.b16 %v690
    %v1252 = vunpack.c.l.b16 %v691
    %v1253 = vunpack.c.l.b16 %v692
    %v1254 = vunpack.c.h.b16 %v692
    %v1255 = vunpack.c.l.b16 %v693
    %v1256 = vunpack.c.h.b16 %v693
    %v1257 = vunpack.c.l.b16 %v694
    %v1258 = vunpack.c.h.b16 %v694
    %v1259 = vunpack.c.l.b16 %v695
    %v1260 = vunpack.c.l.b16 %v696
    %v1261 = vunpack.c.h.b16 %v696
    %v1262 = vunpack.c.l.b16 %v697
    %v1263 = vunpack.c.h.b16 %v697
    %v1264 = vunpack.c.l.b16 %v698
    %v1265 = vunpack.c.h.b16 %v698
    %v1266 = vunpack.c.l.b16 %v699
    %v1267 = vunpack.c.l.b16 %v700
    %v1268 = vunpack.c.h.b16 %v700
    %v1269 = vunpack.c.l.b16 %v701
    %v1270 = vunpack.c.h.b16 %v701
    %v1271 = vunpack.c.l.b16 %v702
    %v1272 = vunpack.c.h.b16 %v702
    %v1273 = vunpack.c.l.b16 %v703
    %v1274 = vunpack.c.l.b16 %v704
    %v1275 = vunpack.c.h.b16 %v704
    %v1276 = vunpack.c.l.b16 %v705
    %v1277 = vunpack.c.h.b16 %v705
    %v1278 = vunpack.c.l.b16 %v706
    %v1279 = vunpack.c.h.b16 %v706
    %v1280 = vunpack.c.l.b16 %v707
    %v1281 = vunpack.c.l.b16 %v708
    %v1282 = vunpack.c.h.b16 %v708
    %v1283 = vunpack.c.l.b16 %v709
    %v1284 = vunpack.c.h.b16 %v709
    %v1285 = vunpack.c.l.b16 %v710
    %v1286 = vunpack.c.h.b16 %v710
    %v1287 = vunpack.c.l.b16 %v711
    %v1288 = vunpack.c.l.b16 %v712
    %v1289 = vunpack.c.h.b16 %v712
    %v1290 = vunpack.c.l.b16 %v713
    %v1291 = vunpack.c.h.b16 %v713
    %v1292 = vunpack.c.l.b16 %v714
    %v1293 = vunpack.c.h.b16 %v714
    %v1294 = vunpack.c.l.b16 %v715
    %v1295 = vunpack.c.l.b16 %v716
    %v1296 = vunpack.c.h.b16 %v716
    %v1297 = vunpack.c.l.b16 %v717
    %v1298 = vunpack.c.h.b16 %v717
    %v1299 = vunpack.c.l.b16 %v718
    %v1300 = vunpack.c.h.b16 %v718
    %v1301 = vunpack.c.l.b16 %v719
    %v1302 = vunpack.c.l.b16 %v720
    %v1303 = vunpack.c.h.b16 %v720
    %v1304 = vunpack.c.l.b16 %v721
    %v1305 = vunpack.c.h.b16 %v721
    %v1306 = vunpack.c.l.b16 %v722
    %v1307 = vunpack.c.h.b16 %v722
    %v1308 = vunpack.c.l.b16 %v723
    %v1309 = vunpack.c.l.b16 %v724
    %v1310 = vunpack.c.h.b16 %v724
    %v1311 = vunpack.c.l.b16 %v725
    %v1312 = vunpack.c.h.b16 %v725
    %v1313 = vunpack.c.l.b16 %v726
    %v1314 = vunpack.c.h.b16 %v726
    %v1315 = vunpack.c.l.b16 %v727
    %v1316 = vunpack.c.l.b16 %v728
    %v1317 = vunpack.c.h.b16 %v728
    %v1318 = vunpack.c.l.b16 %v729
    %v1319 = vunpack.c.h.b16 %v729
    %v1320 = vunpack.c.l.b16 %v730
    %v1321 = vunpack.c.h.b16 %v730
    %v1322 = vunpack.c.l.b16 %v731
    %v1323 = vunpack.c.l.b16 %v732
    %v1324 = vunpack.c.h.b16 %v732
    %v1325 = vunpack.c.l.b16 %v733
    %v1326 = vunpack.c.h.b16 %v733
    %v1327 = vunpack.c.l.b16 %v734
    %v1328 = vunpack.c.h.b16 %v734
    %v1329 = vunpack.c.l.b16 %v735
    %v1330 = vunpack.c.l.b16 %v736
    %v1331 = vunpack.c.h.b16 %v736
    %v1332 = vunpack.c.l.b16 %v737
    %v1333 = vunpack.c.h.b16 %v737
    %v1334 = vunpack.c.l.b16 %v738
    %v1335 = vunpack.c.h.b16 %v738
    %v1336 = vunpack.c.l.b16 %v739
    %v1337 = vunpack.c.l.b16 %v740
    %v1338 = vunpack.c.h.b16 %v740
    %v1339 = vunpack.c.l.b16 %v741
    %v1340 = vunpack.c.h.b16 %v741
    %v1341 = vunpack.c.l.b16 %v742
    %v1342 = vunpack.c.h.b16 %v742
    %v1343 = vunpack.c.l.b16 %v743
    %v1344 = vunpack.c.l.b16 %v744
    %v1345 = vunpack.c.h.b16 %v744
    %v1346 = vunpack.c.l.b16 %v745
    %v1347 = vunpack.c.h.b16 %v745
    %v1348 = vunpack.c.l.b16 %v746
    %v1349 = vunpack.c.h.b16 %v746
    %v1350 = vunpack.c.l.b16 %v747
    %v1351 = vunpack.c.l.b16 %v748
    %v1352 = vunpack.c.h.b16 %v748
    %v1353 = vunpack.c.l.b16 %v749
    %v1354 = vunpack.c.h.b16 %v749
    %v1355 = vunpack.c.l.b16 %v750
    %v1356 = vunpack.c.h.b16 %v750
    %v1357 = vunpack.c.l.b16 %v751
    %v1358 = vunpack.c.l.b16 %v752
    %v1359 = vunpack.c.h.b16 %v752
    %v1360 = vunpack.c.l.b16 %v753
    %v1361 = vunpack.c.h.b16 %v753
    %v1362 = vunpack.c.l.b16 %v754
    %v1363 = vunpack.c.h.b16 %v754
    %v1364 = vunpack.c.l.b16 %v755
    %v1365 = vunpack.c.l.b16 %v756
    %v1366 = vunpack.c.h.b16 %v756
    %v1367 = vunpack.c.l.b16 %v757
    %v1368 = vunpack.c.h.b16 %v757
    %v1369 = vunpack.c.l.b16 %v758
    %v1370 = vunpack.c.h.b16 %v758
    %v1371 = vunpack.c.l.b16 %v759
    %v1372 = vunpack.c.l.b16 %v760
    %v1373 = vunpack.c.h.b16 %v760
    %v1374 = vunpack.c.l.b16 %v761
    %v1375 = vunpack.c.h.b16 %v761
    %v1376 = vunpack.c.l.b16 %v762
    %v1377 = vunpack.c.h.b16 %v762
    %v1378 = vunpack.c.l.b16 %v763
    %v1379 = vunpack.c.l.b16 %v764
    %v1380 = vunpack.c.h.b16 %v764
    %v1381 = vunpack.c.l.b16 %v765
    %v1382 = vunpack.c.h.b16 %v765
    %v1383 = vunpack.c.l.b16 %v766
    %v1384 = vunpack.c.h.b16 %v766
    %v1385 = vunpack.c.l.b16 %v767
    %v1386 = vunpack.c.l.b16 %v768
    %v1387 = vunpack.c.h.b16 %v768
    %v1388 = vunpack.c.l.b16 %v769
    %v1389 = vunpack.c.h.b16 %v769
    %v1390 = vunpack.c.l.b16 %v770
    %v1391 = vunpack.c.h.b16 %v770
    %v1392 = vunpack.c.l.b16 %v771
    %v1393 = vunpack.c.l.b16 %v772
    %v1394 = vunpack.c.h.b16 %v772
    %v1395 = vunpack.c.l.b16 %v773
    %v1396 = vunpack.c.h.b16 %v773
    %v1397 = vunpack.c.l.b16 %v774
    %v1398 = vunpack.c.h.b16 %v774
    %v1399 = vunpack.c.l.b16 %v775
    %v1400 = vunpack.c.l.b16 %v776
    %v1401 = vunpack.c.h.b16 %v776
    %v1402 = vunpack.c.l.b16 %v777
    %v1403 = vunpack.c.h.b16 %v777
    %v1404 = vunpack.c.l.b16 %v778
    %v1405 = vunpack.c.h.b16 %v778
    %v1406 = vunpack.c.l.b16 %v779
    %v1407 = vunpack.c.l.b16 %v780
    %v1408 = vunpack.c.h.b16 %v780
    %v1409 = vunpack.c.l.b16 %v781
    %v1410 = vunpack.c.h.b16 %v781
    %v1411 = vunpack.c.l.b16 %v782
    %v1412 = vunpack.c.h.b16 %v782
    %v1413 = vunpack.c.l.b16 %v783
    %v1414 = vunpack.c.l.b16 %v784
    %v1415 = vunpack.c.h.b16 %v784
    %v1416 = vunpack.c.l.b16 %v785
    %v1417 = vunpack.c.h.b16 %v785
    %v1418 = vunpack.c.l.b16 %v786
    %v1419 = vunpack.c.h.b16 %v786
    %v1420 = vunpack.c.l.b16 %v787
    %v1421 = vunpack.c.l.b16 %v788
    %v1422 = vunpack.c.h.b16 %v788
    %v1423 = vunpack.c.l.b16 %v789
    %v1424 = vunpack.c.h.b16 %v789
    %v1425 = vunpack.c.l.b16 %v790
    %v1426 = vunpack.c.h.b16 %v790
    %v1427 = vunpack.c.l.b16 %v791
    %v1428 = vunpack.c.l.b16 %v792
    %v1429 = vunpack.c.h.b16 %v792
    %v1430 = vunpack.c.l.b16 %v793
    %v1431 = vunpack.c.h.b16 %v793
    %v1432 = vunpack.c.l.b16 %v794
    %v1433 = vunpack.c.h.b16 %v794
    %v1434 = vunpack.c.l.b16 %v795
    %v1435 = vunpack.c.l.b16 %v796
    %v1436 = vunpack.c.h.b16 %v796
    %v1437 = vunpack.c.l.b16 %v797
    %v1438 = vunpack.c.h.b16 %v797
    %v1439 = vunpack.c.l.b16 %v798
    %v1440 = vunpack.c.h.b16 %v798
    %v1441 = vunpack.c.l.b16 %v799
    %v1442 = vunpack.c.l.b16 %v800
    %v1443 = vunpack.c.h.b16 %v800
    %v1444 = vunpack.c.l.b16 %v801
    %v1445 = vunpack.c.h.b16 %v801
    %v1446 = vunpack.c.l.b16 %v802
    %v1447 = vunpack.c.h.b16 %v802
    %v1448 = vunpack.c.l.b16 %v803
    %v1449 = vunpack.c.l.b16 %v804
    %v1450 = vunpack.c.h.b16 %v804
    %v1451 = vunpack.c.l.b16 %v805
    %v1452 = vunpack.c.h.b16 %v805
    %v1453 = vunpack.c.l.b16 %v806
    %v1454 = vunpack.c.h.b16 %v806
    %v1455 = vunpack.c.l.b16 %v807
    %v1456 = vunpack.c.l.b16 %v808
    %v1457 = vunpack.c.h.b16 %v808
    %v1458 = vunpack.c.l.b16 %v809
    %v1459 = vunpack.c.h.b16 %v809
    %v1460 = vunpack.c.l.b16 %v810
    %v1461 = vunpack.c.h.b16 %v810
    %v1462 = vunpack.c.l.b16 %v811
    %v1463 = vunpack.c.l.b16 %v812
    %v1464 = vunpack.c.h.b16 %v812
    %v1465 = vunpack.c.l.b16 %v813
    %v1466 = vunpack.c.h.b16 %v813
    %v1467 = vunpack.c.l.b16 %v814
    %v1468 = vunpack.c.h.b16 %v814
    %v1469 = vunpack.c.l.b16 %v815
    %v1470 = vunpack.c.l.b16 %v816
    %v1471 = vunpack.c.h.b16 %v816
    %v1472 = vunpack.c.l.b16 %v817
    %v1473 = vunpack.c.h.b16 %v817
    %v1474 = vunpack.c.l.b16 %v818
    %v1475 = vunpack.c.h.b16 %v818
    %v1476 = vunpack.c.l.b16 %v819
    %v1477 = vunpack.c.l.b16 %v820
    %v1478 = vunpack.c.h.b16 %v820
    %v1479 = vunpack.c.l.b16 %v821
    %v1480 = vunpack.c.h.b16 %v821
    %v1481 = vunpack.c.l.b16 %v822
    %v1482 = vunpack.c.h.b16 %v822
    %v1483 = vunpack.c.l.b16 %v823
    %v1484 = vunpack.c.l.b16 %v824
    %v1485 = vunpack.c.h.b16 %v824
    %v1486 = vunpack.c.l.b16 %v825
    %v1487 = vunpack.c.h.b16 %v825
    %v1488 = vunpack.c.l.b16 %v826
    %v1489 = vunpack.c.h.b16 %v826
    %v1490 = vunpack.c.l.b16 %v827
    %v1491 = vunpack.c.l.b16 %v828
    %v1492 = vunpack.c.h.b16 %v828
    %v1493 = vunpack.c.l.b16 %v829
    %v1494 = vunpack.c.h.b16 %v829
    %v1495 = vunpack.c.l.b16 %v830
    %v1496 = vunpack.c.h.b16 %v830
    %v1497 = vunpack.c.l.b16 %v831
    %v1498 = vunpack.c.l.b16 %v832
    %v1499 = vunpack.c.h.b16 %v832
    %v1500 = vunpack.c.l.b16 %v833
    %v1501 = vunpack.c.h.b16 %v833
    %v1502 = vunpack.c.l.b16 %v834
    %v1503 = vunpack.c.h.b16 %v834
    %v1504 = vunpack.c.l.b16 %v835
    %v1505 = vunpack.c.l.b16 %v836
    %v1506 = vunpack.c.h.b16 %v836
    %v1507 = vunpack.c.l.b16 %v837
    %v1508 = vunpack.c.h.b16 %v837
    %v1509 = vunpack.c.l.b16 %v838
    %v1510 = vunpack.c.h.b16 %v838
    %v1511 = vunpack.c.l.b16 %v839
    %v1512 = vunpack.c.l.b16 %v840
    %v1513 = vunpack.c.h.b16 %v840
    %v1514 = vunpack.c.l.b16 %v841
    %v1515 = vunpack.c.h.b16 %v841
    %v1516 = vunpack.c.l.b16 %v842
    %v1517 = vunpack.c.h.b16 %v842
    %v1518 = vunpack.c.l.b16 %v843
    %v1519 = vunpack.c.l.b16 %v844
    %v1520 = vunpack.c.h.b16 %v844
    %v1521 = vunpack.c.l.b16 %v845
    %v1522 = vunpack.c.h.b16 %v845
    %v1523 = vunpack.c.l.b16 %v846
    %v1524 = vunpack.c.h.b16 %v846
    %v1525 = vunpack.c.l.b16 %v847
    %v1526 = vunpack.c.l.b16 %v848
    %v1527 = vunpack.c.h.b16 %v848
    %v1528 = vunpack.c.l.b16 %v849
    %v1529 = vunpack.c.h.b16 %v849
    %v1530 = vunpack.c.l.b16 %v850
    %v1531 = vunpack.c.h.b16 %v850
    %v1532 = vunpack.c.l.b16 %v851
    %v1533 = vunpack.c.l.b16 %v852
    %v1534 = vunpack.c.h.b16 %v852
    %v1535 = vunpack.c.l.b16 %v853
    %v1536 = vunpack.c.h.b16 %v853
    %v1537 = vunpack.c.l.b16 %v854
    %v1538 = vunpack.c.h.b16 %v854
    %v1539 = vunpack.c.l.b16 %v855
    %v1540 = vunpack.c.l.b16 %v856
    %v1541 = vunpack.c.h.b16 %v856
    %v1542 = vunpack.c.l.b16 %v857
    %v1543 = vunpack.c.h.b16 %v857
    %v1544 = vunpack.c.l.b16 %v858
    %v1545 = vunpack.c.h.b16 %v858
    %v1546 = vunpack.c.l.b16 %v859
    %v1547 = vunpack.c.l.b16 %v860
    %v1548 = vunpack.c.h.b16 %v860
    %v1549 = vunpack.c.l.b16 %v861
    %v1550 = vunpack.c.h.b16 %v861
    %v1551 = vunpack.c.l.b16 %v862
    %v1552 = vunpack.c.h.b16 %v862
    %v1553 = vunpack.c.l.b16 %v863
    %v1554 = vunpack.c.l.b16 %v864
    %v1555 = vunpack.c.h.b16 %v864
    %v1556 = vunpack.c.l.b16 %v865
    %v1557 = vunpack.c.h.b16 %v865
    %v1558 = vunpack.c.l.b16 %v866
    %v1559 = vunpack.c.h.b16 %v866
    %v1560 = vunpack.c.l.b16 %v867
    %v1561 = vunpack.c.l.b16 %v868
    %v1562 = vunpack.c.h.b16 %v868
    %v1563 = vunpack.c.l.b16 %v869
    %v1564 = vunpack.c.h.b16 %v869
    %v1565 = vunpack.c.l.b16 %v870
    %v1566 = vunpack.c.h.b16 %v870
    %v1567 = vunpack.c.l.b16 %v871
    %v1568 = vunpack.c.l.b16 %v872
    %v1569 = vunpack.c.h.b16 %v872
    %v1570 = vunpack.c.l.b16 %v873
    %v1571 = vunpack.c.h.b16 %v873
    %v1572 = vunpack.c.l.b16 %v874
    %v1573 = vunpack.c.h.b16 %v874
    %v1574 = vunpack.c.l.b16 %v875
    %v1575 = vunpack.c.l.b16 %v876
    %v1576 = vunpack.c.h.b16 %v876
    %v1577 = vunpack.c.l.b16 %v877
    %v1578 = vunpack.c.h.b16 %v877
    %v1579 = vunpack.c.l.b16 %v878
    %v1580 = vunpack.c.h.b16 %v878
    %v1581 = vunpack.c.l.b16 %v879
    %v1582 = vunpack.c.l.b16 %v880
    %v1583 = vunpack.c.h.b16 %v880
    %v1584 = vunpack.c.l.b16 %v881
    %v1585 = vunpack.c.h.b16 %v881
    %v1586 = vunpack.c.l.b16 %v882
    %v1587 = vunpack.c.h.b16 %v882
    %v1588 = vunpack.c.l.b16 %v883
    %v1589 = vunpack.c.l.b16 %v884
    %v1590 = vunpack.c.h.b16 %v884
    %v1591 = vunpack.c.l.b16 %v885
    %v1592 = vunpack.c.h.b16 %v885
    %v1593 = vunpack.c.l.b16 %v886
    %v1594 = vunpack.c.h.b16 %v886
    %v1595 = vunpack.c.l.b16 %v887
    %v1596 = vunpack.c.l.b16 %v888
    %v1597 = vunpack.c.h.b16 %v888
    %v1598 = vunpack.c.l.b16 %v889
    %v1599 = vunpack.c.h.b16 %v889
    %v1600 = vunpack.c.l.b16 %v890
    %v1601 = vunpack.c.h.b16 %v890
    %v1602 = vunpack.c.l.b16 %v891
    %v1603 = vunpack.c.l.b16 %v892
    %v1604 = vunpack.c.h.b16 %v892
    %v1605 = vunpack.c.l.b16 %v893
    %v1606 = vunpack.c.h.b16 %v893
    %v1607 = vunpack.c.l.b16 %v894
    %v1608 = vunpack.c.h.b16 %v894
    %v1609 = vunpack.c.l.b16 %v895
    %v1610 = vunpack.c.l.b16 %v896
    %v1611 = vunpack.c.h.b16 %v896
    %v1612 = vunpack.c.l.b16 %v897
    %v1613 = vunpack.c.h.b16 %v897
    %v1614 = vunpack.c.l.b16 %v898
    %v1615 = vunpack.c.h.b16 %v898
    %v1616 = vunpack.c.l.b16 %v899
    %v1617 = vunpack.c.l.b16 %v900
    %v1618 = vunpack.c.h.b16 %v900
    %v1619 = vunpack.c.l.b16 %v901
    %v1620 = vunpack.c.h.b16 %v901
    %v1621 = vunpack.c.l.b16 %v902
    %v1622 = vunpack.c.h.b16 %v902
    %v1623 = vunpack.c.l.b16 %v903
    %v1624 = vunpack.c.l.b16 %v904
    %v1625 = vunpack.c.h.b16 %v904
    %v1626 = vunpack.c.l.b16 %v905
    %v1627 = vunpack.c.h.b16 %v905
    %v1628 = vunpack.c.l.b16 %v906
    %v1629 = vunpack.c.h.b16 %v906
    %v1630 = vunpack.c.l.b16 %v907
    %v1631 = vunpack.c.l.b16 %v908
    %v1632 = vunpack.c.h.b16 %v908
    %v1633 = vunpack.c.l.b16 %v909
    %v1634 = vunpack.c.h.b16 %v909
    %v1635 = vunpack.c.l.b16 %v910
    %v1636 = vunpack.c.h.b16 %v910
    %v1637 = vunpack.c.l.b16 %v911
    %v1638 = vunpack.c.l.b16 %v912
    %v1639 = vunpack.c.h.b16 %v912
    %v1640 = vunpack.c.l.b16 %v913
    %v1641 = vunpack.c.h.b16 %v913
    %v1642 = vunpack.c.l.b16 %v914
    %v1643 = vunpack.c.h.b16 %v914
    %v1644 = vunpack.c.l.b16 %v915
    %v1645 = vunpack.c.l.b16 %v916
    %v1646 = vunpack.c.h.b16 %v916
    %v1647 = vunpack.c.l.b16 %v917
    %v1648 = vunpack.c.h.b16 %v917
    %v1649 = vunpack.c.l.b16 %v918
    %v1650 = vunpack.c.h.b16 %v918
    %v1651 = vunpack.c.l.b16 %v919
    %v1652 = vunpack.c.l.b16 %v920
    %v1653 = vunpack.c.h.b16 %v920
    %v1654 = vunpack.c.l.b16 %v921
    %v1655 = vunpack.c.h.b16 %v921
    %v1656 = vunpack.c.l.b16 %v922
    %v1657 = vunpack.c.h.b16 %v922
    %v1658 = vunpack.c.l.b16 %v923
    %v1659 = vunpack.c.l.b16 %v924
    %v1660 = vunpack.c.h.b16 %v924
    %v1661 = vunpack.c.l.b16 %v925
    %v1662 = vunpack.c.h.b16 %v925
    %v1663 = vunpack.c.l.b16 %v926
    %v1664 = vunpack.c.h.b16 %v926
    %v1665 = vunpack.c.l.b16 %v927
    %v1666 = vunpack.c.l.b16 %v928
    %v1667 = vunpack.c.h.b16 %v928
    %v1668 = vunpack.c.l.b16 %v929
    %v1669 = vunpack.c.h.b16 %v929
    %v1670 = vunpack.c.l.b16 %v930
    %v1671 = vunpack.c.h.b16 %v930
    %v1672 = vunpack.c.l.b16 %v931
    %v1673 = vpack.c.b16 %v1232, %v1225
    %v1674 = vpack.c.b16 %v1233, %v1226
    %v1675 = vpack.c.b16 %v1234, %v1227
    %v1676 = vpack.c.b16 %v1235, %v1228
    %v1677 = vpack.c.b16 %v1236, %v1229
    %v1678 = vpack.c.b16 %v1237, %v1230
    %v1679 = vpack.c.b16 %v1238, %v1231
    %v1680 = vpack.c.b16 %v1246, %v1239
    %v1681 = vpack.c.b16 %v1247, %v1240
    %v1682 = vpack.c.b16 %v1248, %v1241
    %v1683 = vpack.c.b16 %v1249, %v1242
    %v1684 = vpack.c.b16 %v1250, %v1243
    %v1685 = vpack.c.b16 %v1251, %v1244
    %v1686 = vpack.c.b16 %v1252, %v1245
    %v1687 = vpack.c.b16 %v1260, %v1253
    %v1688 = vpack.c.b16 %v1261, %v1254
    %v1689 = vpack.c.b16 %v1262, %v1255
    %v1690 = vpack.c.b16 %v1263, %v1256
    %v1691 = vpack.c.b16 %v1264, %v1257
    %v1692 = vpack.c.b16 %v1265, %v1258
    %v1693 = vpack.c.b16 %v1266, %v1259
    %v1694 = vpack.c.b16 %v1274, %v1267
    %v1695 = vpack.c.b16 %v1275, %v1268
    %v1696 = vpack.c.b16 %v1276, %v1269
    %v1697 = vpack.c.b16 %v1277, %v1270
    %v1698 = vpack.c.b16 %v1278, %v1271
    %v1699 = vpack.c.b16 %v1279, %v1272
    %v1700 = vpack.c.b16 %v1280, %v1273
    %v1701 = vpack.c.b16 %v1288, %v1281
    %v1702 = vpack.c.b16 %v1289, %v1282
    %v1703 = vpack.c.b16 %v1290, %v1283
    %v1704 = vpack.c.b16 %v1291, %v1284
    %v1705 = vpack.c.b16 %v1292, %v1285
    %v1706 = vpack.c.b16 %v1293, %v1286
    %v1707 = vpack.c.b16 %v1294, %v1287
    %v1708 = vpack.c.b16 %v1302, %v1295
    %v1709 = vpack.c.b16 %v1303, %v1296
    %v1710 = vpack.c.b16 %v1304, %v1297
    %v1711 = vpack.c.b16 %v1305, %v1298
    %v1712 = vpack.c.b16 %v1306, %v1299
    %v1713 = vpack.c.b16 %v1307, %v1300
    %v1714 = vpack.c.b16 %v1308, %v1301
    %v1715 = vpack.c.b16 %v1316, %v1309
    %v1716 = vpack.c.b16 %v1317, %v1310
    %v1717 = vpack.c.b16 %v1318, %v1311
    %v1718 = vpack.c.b16 %v1319, %v1312
    %v1719 = vpack.c.b16 %v1320, %v1313
    %v1720 = vpack.c.b16 %v1321, %v1314
    %v1721 = vpack.c.b16 %v1322, %v1315
    %v1722 = vpack.c.b16 %v1330, %v1323
    %v1723 = vpack.c.b16 %v1331, %v1324
    %v1724 = vpack.c.b16 %v1332, %v1325
    %v1725 = vpack.c.b16 %v1333, %v1326
    %v1726 = vpack.c.b16 %v1334, %v1327
    %v1727 = vpack.c.b16 %v1335, %v1328
    %v1728 = vpack.c.b16 %v1336, %v1329
    %v1729 = vpack.c.b16 %v1344, %v1337
    %v1730 = vpack.c.b16 %v1345, %v1338
    %v1731 = vpack.c.b16 %v1346, %v1339
    %v1732 = vpack.c.b16 %v1347, %v1340
    %v1733 = vpack.c.b16 %v1348, %v1341
    %v1734 = vpack.c.b16 %v1349, %v1342
    %v1735 = vpack.c.b16 %v1350, %v1343
    %v1736 = vpack.c.b16 %v1358, %v1351
    %v1737 = vpack.c.b16 %v1359, %v1352
    %v1738 = vpack.c.b16 %v1360, %v1353
    %v1739 = vpack.c.b16 %v1361, %v1354
    %v1740 = vpack.c.b16 %v1362, %v1355
    %v1741 = vpack.c.b16 %v1363, %v1356
    %v1742 = vpack.c.b16 %v1364, %v1357
    %v1743 = vpack.c.b16 %v1372, %v1365
    %v1744 = vpack.c.b16 %v1373, %v1366
    %v1745 = vpack.c.b16 %v1374, %v1367
    %v1746 = vpack.c.b16 %v1375, %v1368
    %v1747 = vpack.c.b16 %v1376, %v1369
    %v1748 = vpack.c.b16 %v1377, %v1370
    %v1749 = vpack.c.b16 %v1378, %v1371
    %v1750 = vpack.c.b16 %v1386, %v1379
    %v1751 = vpack.c.b16 %v1387, %v1380
    %v1752 = vpack.c.b16 %v1388, %v1381
    %v1753 = vpack.c.b16 %v1389, %v1382
    %v1754 = vpack.c.b16 %v1390, %v1383
    %v1755 = vpack.c.b16 %v1391, %v1384
    %v1756 = vpack.c.b16 %v1392, %v1385
    %v1757 = vpack.c.b16 %v1400, %v1393
    %v1758 = vpack.c.b16 %v1401, %v1394
    %v1759 = vpack.c.b16 %v1402, %v1395
    %v1760 = vpack.c.b16 %v1403, %v1396
    %v1761 = vpack.c.b16 %v1404, %v1397
    %v1762 = vpack.c.b16 %v1405, %v1398
    %v1763 = vpack.c.b16 %v1406, %v1399
    %v1764 = vpack.c.b16 %v1414, %v1407
    %v1765 = vpack.c.b16 %v1415, %v1408
    %v1766 = vpack.c.b16 %v1416, %v1409
    %v1767 = vpack.c.b16 %v1417, %v1410
    %v1768 = vpack.c.b16 %v1418, %v1411
    %v1769 = vpack.c.b16 %v1419, %v1412
    %v1770 = vpack.c.b16 %v1420, %v1413
    %v1771 = vpack.c.b16 %v1428, %v1421
    %v1772 = vpack.c.b16 %v1429, %v1422
    %v1773 = vpack.c.b16 %v1430, %v1423
    %v1774 = vpack.c.b16 %v1431, %v1424
    %v1775 = vpack.c.b16 %v1432, %v1425
    %v1776 = vpack.c.b16 %v1433, %v1426
    %v1777 = vpack.c.b16 %v1434, %v1427
    %v1778 = vpack.c.b16 %v1442, %v1435
    %v1779 = vpack.c.b16 %v1443, %v1436
    %v1780 = vpack.c.b16 %v1444, %v1437
    %v1781 = vpack.c.b16 %v1445, %v1438
    %v1782 = vpack.c.b16 %v1446, %v1439
    %v1783 = vpack.c.b16 %v1447, %v1440
    %v1784 = vpack.c.b16 %v1448, %v1441
    %v1785 = vpack.c.b16 %v1456, %v1449
    %v1786 = vpack.c.b16 %v1457, %v1450
    %v1787 = vpack.c.b16 %v1458, %v1451
    %v1788 = vpack.c.b16 %v1459, %v1452
    %v1789 = vpack.c.b16 %v1460, %v1453
    %v1790 = vpack.c.b16 %v1461, %v1454
    %v1791 = vpack.c.b16 %v1462, %v1455
    %v1792 = vpack.c.b16 %v1470, %v1463
    %v1793 = vpack.c.b16 %v1471, %v1464
    %v1794 = vpack.c.b16 %v1472, %v1465
    %v1795 = vpack.c.b16 %v1473, %v1466
    %v1796 = vpack.c.b16 %v1474, %v1467
    %v1797 = vpack.c.b16 %v1475, %v1468
    %v1798 = vpack.c.b16 %v1476, %v1469
    %v1799 = vpack.c.b16 %v1484, %v1477
    %v1800 = vpack.c.b16 %v1485, %v1478
    %v1801 = vpack.c.b16 %v1486, %v1479
    %v1802 = vpack.c.b16 %v1487, %v1480
    %v1803 = vpack.c.b16 %v1488, %v1481
    %v1804 = vpack.c.b16 %v1489, %v1482
    %v1805 = vpack.c.b16 %v1490, %v1483
    %v1806 = vpack.c.b16 %v1498, %v1491
    %v1807 = vpack.c.b16 %v1499, %v1492
    %v1808 = vpack.c.b16 %v1500, %v1493
    %v1809 = vpack.c.b16 %v1501, %v1494
    %v1810 = vpack.c.b16 %v1502, %v1495
    %v1811 = vpack.c.b16 %v1503, %v1496
    %v1812 = vpack.c.b16 %v1504, %v1497
    %v1813 = vpack.c.b16 %v1512, %v1505
    %v1814 = vpack.c.b16 %v1513, %v1506
    %v1815 = vpack.c.b16 %v1514, %v1507
    %v1816 = vpack.c.b16 %v1515, %v1508
    %v1817 = vpack.c.b16 %v1516, %v1509
    %v1818 = vpack.c.b16 %v1517, %v1510
    %v1819 = vpack.c.b16 %v1518, %v1511
    %v1820 = vpack.c.b16 %v1526, %v1519
    %v1821 = vpack.c.b16 %v1527, %v1520
    %v1822 = vpack.c.b16 %v1528, %v1521
    %v1823 = vpack.c.b16 %v1529, %v1522
    %v1824 = vpack.c.b16 %v1530, %v1523
    %v1825 = vpack.c.b16 %v1531, %v1524
    %v1826 = vpack.c.b16 %v1532, %v1525
    %v1827 = vpack.c.b16 %v1540, %v1533
    %v1828 = vpack.c.b16 %v1541, %v1534
    %v1829 = vpack.c.b16 %v1542, %v1535
    %v1830 = vpack.c.b16 %v1543, %v1536
    %v1831 = vpack.c.b16 %v1544, %v1537
    %v1832 = vpack.c.b16 %v1545, %v1538
    %v1833 = vpack.c.b16 %v1546, %v1539
    %v1834 = vpack.c.b16 %v1554, %v1547
    %v1835 = vpack.c.b16 %v1555, %v1548
    %v1836 = vpack.c.b16 %v1556, %v1549
    %v1837 = vpack.c.b16 %v1557, %v1550
    %v1838 = vpack.c.b16 %v1558, %v1551
    %v1839 = vpack.c.b16 %v1559, %v1552
    %v1840 = vpack.c.b16 %v1560, %v1553
    %v1841 = vpack.c.b16 %v1568, %v1561
    %v1842 = vpack.c.b16 %v1569, %v1562
    %v1843 = vpack.c.b16 %v1570, %v1563
    %v1844 = vpack.c.b16 %v1571, %v1564
    %v1845 = vpack.c.b16 %v1572, %v1565
    %v1846 = vpack.c.b16 %v1573, %v1566
    %v1847 = vpack.c.b16 %v1574, %v1567
    %v1848 = vpack.c.b16 %v1582, %v1575
    %v1849 = vpack.c.b16 %v1583, %v1576
    %v1850 = vpack.c.b16 %v1584, %v1577
    %v1851 = vpack.c.b16 %v1585, %v1578
    %v1852 = vpack.c.b16 %v1586, %v1579
    %v1853 = vpack.c.b16 %v1587, %v1580
    %v1854 = vpack.c.b16 %v1588, %v1581
    %v1855 = vpack.c.b16 %v1596, %v1589
    %v1856 = vpack.c.b16 %v1597, %v1590
    %v1857 = vpack.c.b16 %v1598, %v1591
    %v1858 = vpack.c.b16 %v1599, %v1592
    %v1859 = vpack.c.b16 %v1600, %v1593
    %v1860 = vpack.c.b16 %v1601, %v1594
    %v1861 = vpack.c.b16 %v1602, %v1595
    %v1862 = vpack.c.b16 %v1610, %v1603
    %v1863 = vpack.c.b16 %v1611, %v1604
    %v1864 = vpack.c.b16 %v1612, %v1605
    %v1865 = vpack.c.b16 %v1613, %v1606
    %v1866 = vpack.c.b16 %v1614, %v1607
    %v1867 = vpack.c.b16 %v1615, %v1608
    %v1868 = vpack.c.b16 %v1616, %v1609
    %v1869 = vpack.c.b16 %v1624, %v1617
    %v1870 = vpack.c.b16 %v1625, %v1618
    %v1871 = vpack.c.b16 %v1626, %v1619
    %v1872 = vpack.c.b16 %v1627, %v1620
    %v1873 = vpack.c.b16 %v1628, %v1621
    %v1874 = vpack.c.b16 %v1629, %v1622
    %v1875 = vpack.c.b16 %v1630, %v1623
    %v1876 = vpack.c.b16 %v1638, %v1631
    %v1877 = vpack.c.b16 %v1639, %v1632
    %v1878 = vpack.c.b16 %v1640, %v1633
    %v1879 = vpack.c.b16 %v1641, %v1634
    %v1880 = vpack.c.b16 %v1642, %v1635
    %v1881 = vpack.c.b16 %v1643, %v1636
    %v1882 = vpack.c.b16 %v1644, %v1637
    %v1883 = vpack.c.b16 %v1652, %v1645
    %v1884 = vpack.c.b16 %v1653, %v1646
    %v1885 = vpack.c.b16 %v1654, %v1647
    %v1886 = vpack.c.b16 %v1655, %v1648
    %v1887 = vpack.c.b16 %v1656, %v1649
    %v1888 = vpack.c.b16 %v1657, %v1650
    %v1889 = vpack.c.b16 %v1658, %v1651
    %v1890 = vpack.c.b16 %v1666, %v1659
    %v1891 = vpack.c.b16 %v1667, %v1660
    %v1892 = vpack.c.b16 %v1668, %v1661
    %v1893 = vpack.c.b16 %v1669, %v1662
    %v1894 = vpack.c.b16 %v1670, %v1663
    %v1895 = vpack.c.b16 %v1671, %v1664
    %v1896 = vpack.c.b16 %v1672, %v1665
    %2121 = vmatprep.subr.bf16.mxu0 %v1674
    %2122 = vmatpush1.bf16.msra.mxu0 %v1673
    %2123 = vmatprep.subr.bf16.mxu0 %v1681
    %2124 = vmatpush1.bf16.msra.mxu0 %v1680
    %2125 = vmatprep.subr.bf16.mxu0 %v1688
    %2126 = vmatpush1.bf16.msra.mxu0 %v1687
    %2127 = vmatprep.subr.bf16.mxu0 %v1695
    %2128 = vmatpush1.bf16.msra.mxu0 %v1694
    %2129 = vmatprep.subr.bf16.mxu0 %v1702
    %2130 = vmatpush1.bf16.msra.mxu0 %v1701
    %2131 = vmatprep.subr.bf16.mxu0 %v1709
    %2132 = vmatpush1.bf16.msra.mxu0 %v1708
    %2133 = vmatprep.subr.bf16.mxu0 %v1716
    %2134 = vmatpush1.bf16.msra.mxu0 %v1715
    %2135 = vmatprep.subr.bf16.mxu0 %v1723
    %2136 = vmatpush1.bf16.msra.mxu0 %v1722
    %2137 = vmatprep.subr.bf16.mxu0 %v1730
    %2138 = vmatpush1.bf16.msra.mxu0 %v1729
    %2139 = vmatprep.subr.bf16.mxu0 %v1737
    %2140 = vmatpush1.bf16.msra.mxu0 %v1736
    %2141 = vmatprep.subr.bf16.mxu0 %v1744
    %2142 = vmatpush1.bf16.msra.mxu0 %v1743
    %2143 = vmatprep.subr.bf16.mxu0 %v1751
    %2144 = vmatpush1.bf16.msra.mxu0 %v1750
    %2145 = vmatprep.subr.bf16.mxu0 %v1758
    %2146 = vmatpush1.bf16.msra.mxu0 %v1757
    %2147 = vmatprep.subr.bf16.mxu0 %v1765
    %2148 = vmatpush1.bf16.msra.mxu0 %v1764
    %2149 = vmatprep.subr.bf16.mxu0 %v1772
    %2150 = vmatpush1.bf16.msra.mxu0 %v1771
    %2151 = vmatprep.subr.bf16.mxu0 %v1779
    %2152 = vmatpush1.bf16.msra.mxu0 %v1778
    %2153 = vmatprep.mubr.bf16.mxu0 %v673
    %2154 = vmatmul.mubr.bf16.gmra.mrb[0].mxu0 %v672
    %v2155 = vpop.f32.mrb[0].mxu0
    %v2156 = vadd.f32 %v937, %v2155
    %v2157 = vpop.f32.mrb[0].mxu0
    %v2158 = vadd.f32 %v941, %v2157
    %v2159 = vpop.f32.mrb[0].mxu0
    %v2160 = vpop.f32.mrb[0].mxu0
    %2161 = vdwg.mxu0
    %2162 = vmatprep.subr.bf16.mxu0 %v1786
    %2163 = vmatpush1.bf16.msra.mxu0 %v1785
    %2164 = vmatprep.subr.bf16.mxu0 %v1793
    %2165 = vmatpush1.bf16.msra.mxu0 %v1792
    %2166 = vmatprep.subr.bf16.mxu0 %v1800
    %2167 = vmatpush1.bf16.msra.mxu0 %v1799
    %2168 = vmatprep.subr.bf16.mxu0 %v1807
    %2169 = vmatpush1.bf16.msra.mxu0 %v1806
    %2170 = vmatprep.subr.bf16.mxu0 %v1814
    %2171 = vmatpush1.bf16.msra.mxu0 %v1813
    %2172 = vmatprep.subr.bf16.mxu0 %v1821
    %2173 = vmatpush1.bf16.msra.mxu0 %v1820
    %2174 = vmatprep.subr.bf16.mxu0 %v1828
    %2175 = vmatpush1.bf16.msra.mxu0 %v1827
    %2176 = vmatprep.subr.bf16.mxu0 %v1835
    %2177 = vmatpush1.bf16.msra.mxu0 %v1834
    %2178 = vmatprep.subr.bf16.mxu0 %v1842
    %2179 = vmatpush1.bf16.msra.mxu0 %v1841
    %2180 = vmatprep.subr.bf16.mxu0 %v1849
    %2181 = vmatpush1.bf16.msra.mxu0 %v1848
    %2182 = vmatprep.subr.bf16.mxu0 %v1856
    %2183 = vmatpush1.bf16.msra.mxu0 %v1855
    %2184 = vmatprep.subr.bf16.mxu0 %v1863
    %2185 = vmatpush1.bf16.msra.mxu0 %v1862
    %2186 = vmatprep.subr.bf16.mxu0 %v1870
    %2187 = vmatpush1.bf16.msra.mxu0 %v1869
    %2188 = vmatprep.subr.bf16.mxu0 %v1877
    %2189 = vmatpush1.bf16.msra.mxu0 %v1876
    %2190 = vmatprep.subr.bf16.mxu0 %v1884
    %2191 = vmatpush1.bf16.msra.mxu0 %v1883
    %2192 = vmatprep.subr.bf16.mxu0 %v1891
    %2193 = vmatpush1.bf16.msra.mxu0 %v1890
    %2194 = vmatprep.mubr.bf16.mxu0 %v675
    %2195 = vmatmul.mubr.bf16.gmra.mrb[0].mxu0 %v674
    %v2196 = vpop.f32.mrb[0].mxu0
    %v2197 = vadd.f32 %v2156, %v2196
    %v2198 = vpop.f32.mrb[0].mxu0
    %v2199 = vadd.f32 %v2158, %v2198
    %v2200 = vpop.f32.mrb[0].mxu0
    %v2201 = vpop.f32.mrb[0].mxu0
    %2202 = vdwg.mxu0
    %2203 = vmatprep.subr.bf16.mxu0 %v1676
    %2204 = vmatpush1.bf16.msra.mxu0 %v1675
    %2205 = vmatprep.subr.bf16.mxu0 %v1683
    %2206 = vmatpush1.bf16.msra.mxu0 %v1682
    %2207 = vmatprep.subr.bf16.mxu0 %v1690
    %2208 = vmatpush1.bf16.msra.mxu0 %v1689
    %2209 = vmatprep.subr.bf16.mxu0 %v1697
    %2210 = vmatpush1.bf16.msra.mxu0 %v1696
    %2211 = vmatprep.subr.bf16.mxu0 %v1704
    %2212 = vmatpush1.bf16.msra.mxu0 %v1703
    %2213 = vmatprep.subr.bf16.mxu0 %v1711
    %2214 = vmatpush1.bf16.msra.mxu0 %v1710
    %2215 = vmatprep.subr.bf16.mxu0 %v1718
    %2216 = vmatpush1.bf16.msra.mxu0 %v1717
    %2217 = vmatprep.subr.bf16.mxu0 %v1725
    %2218 = vmatpush1.bf16.msra.mxu0 %v1724
    %2219 = vmatprep.subr.bf16.mxu0 %v1732
    %2220 = vmatpush1.bf16.msra.mxu0 %v1731
    %2221 = vmatprep.subr.bf16.mxu0 %v1739
    %2222 = vmatpush1.bf16.msra.mxu0 %v1738
    %2223 = vmatprep.subr.bf16.mxu0 %v1746
    %2224 = vmatpush1.bf16.msra.mxu0 %v1745
    %2225 = vmatprep.subr.bf16.mxu0 %v1753
    %2226 = vmatpush1.bf16.msra.mxu0 %v1752
    %2227 = vmatprep.subr.bf16.mxu0 %v1760
    %2228 = vmatpush1.bf16.msra.mxu0 %v1759
    %2229 = vmatprep.subr.bf16.mxu0 %v1767
    %2230 = vmatpush1.bf16.msra.mxu0 %v1766
    %2231 = vmatprep.subr.bf16.mxu0 %v1774
    %2232 = vmatpush1.bf16.msra.mxu0 %v1773
    %2233 = vmatprep.subr.bf16.mxu0 %v1781
    %2234 = vmatpush1.bf16.msra.mxu0 %v1780
    %2235 = vmatprep.mubr.bf16.mxu0 %v673
    %2236 = vmatmul.mubr.bf16.gmra.mrb[0].mxu0 %v672
    %v2237 = vpop.f32.mrb[0].mxu0
    %v2238 = vadd.f32 %v945, %v2237
    %v2239 = vpop.f32.mrb[0].mxu0
    %v2240 = vadd.f32 %v949, %v2239
    %v2241 = vpop.f32.mrb[0].mxu0
    %v2242 = vpop.f32.mrb[0].mxu0
    %2243 = vdwg.mxu0
    %2244 = vmatprep.subr.bf16.mxu0 %v1788
    %2245 = vmatpush1.bf16.msra.mxu0 %v1787
    %2246 = vmatprep.subr.bf16.mxu0 %v1795
    %2247 = vmatpush1.bf16.msra.mxu0 %v1794
    %2248 = vmatprep.subr.bf16.mxu0 %v1802
    %2249 = vmatpush1.bf16.msra.mxu0 %v1801
    %2250 = vmatprep.subr.bf16.mxu0 %v1809
    %2251 = vmatpush1.bf16.msra.mxu0 %v1808
    %2252 = vmatprep.subr.bf16.mxu0 %v1816
    %2253 = vmatpush1.bf16.msra.mxu0 %v1815
    %2254 = vmatprep.subr.bf16.mxu0 %v1823
    %2255 = vmatpush1.bf16.msra.mxu0 %v1822
    %2256 = vmatprep.subr.bf16.mxu0 %v1830
    %2257 = vmatpush1.bf16.msra.mxu0 %v1829
    %2258 = vmatprep.subr.bf16.mxu0 %v1837
    %2259 = vmatpush1.bf16.msra.mxu0 %v1836
    %2260 = vmatprep.subr.bf16.mxu0 %v1844
    %2261 = vmatpush1.bf16.msra.mxu0 %v1843
    %2262 = vmatprep.subr.bf16.mxu0 %v1851
    %2263 = vmatpush1.bf16.msra.mxu0 %v1850
    %2264 = vmatprep.subr.bf16.mxu0 %v1858
    %2265 = vmatpush1.bf16.msra.mxu0 %v1857
    %2266 = vmatprep.subr.bf16.mxu0 %v1865
    %2267 = vmatpush1.bf16.msra.mxu0 %v1864
    %2268 = vmatprep.subr.bf16.mxu0 %v1872
    %2269 = vmatpush1.bf16.msra.mxu0 %v1871
    %2270 = vmatprep.subr.bf16.mxu0 %v1879
    %2271 = vmatpush1.bf16.msra.mxu0 %v1878
    %2272 = vmatprep.subr.bf16.mxu0 %v1886
    %2273 = vmatpush1.bf16.msra.mxu0 %v1885
    %2274 = vmatprep.subr.bf16.mxu0 %v1893
    %2275 = vmatpush1.bf16.msra.mxu0 %v1892
    %2276 = vmatprep.mubr.bf16.mxu0 %v675
    %2277 = vmatmul.mubr.bf16.gmra.mrb[0].mxu0 %v674
    %v2278 = vpop.f32.mrb[0].mxu0
    %v2279 = vadd.f32 %v2238, %v2278
    %v2280 = vpop.f32.mrb[0].mxu0
    %v2281 = vadd.f32 %v2240, %v2280
    %v2282 = vpop.f32.mrb[0].mxu0
    %v2283 = vpop.f32.mrb[0].mxu0
    %2284 = vdwg.mxu0
    %2285 = vmatprep.subr.bf16.mxu0 %v1678
    %2286 = vmatpush1.bf16.msra.mxu0 %v1677
    %2287 = vmatprep.subr.bf16.mxu0 %v1685
    %2288 = vmatpush1.bf16.msra.mxu0 %v1684
    %2289 = vmatprep.subr.bf16.mxu0 %v1692
    %2290 = vmatpush1.bf16.msra.mxu0 %v1691
    %2291 = vmatprep.subr.bf16.mxu0 %v1699
    %2292 = vmatpush1.bf16.msra.mxu0 %v1698
    %2293 = vmatprep.subr.bf16.mxu0 %v1706
    %2294 = vmatpush1.bf16.msra.mxu0 %v1705
    %2295 = vmatprep.subr.bf16.mxu0 %v1713
    %2296 = vmatpush1.bf16.msra.mxu0 %v1712
    %2297 = vmatprep.subr.bf16.mxu0 %v1720
    %2298 = vmatpush1.bf16.msra.mxu0 %v1719
    %2299 = vmatprep.subr.bf16.mxu0 %v1727
    %2300 = vmatpush1.bf16.msra.mxu0 %v1726
    %2301 = vmatprep.subr.bf16.mxu0 %v1734
    %2302 = vmatpush1.bf16.msra.mxu0 %v1733
    %2303 = vmatprep.subr.bf16.mxu0 %v1741
    %2304 = vmatpush1.bf16.msra.mxu0 %v1740
    %2305 = vmatprep.subr.bf16.mxu0 %v1748
    %2306 = vmatpush1.bf16.msra.mxu0 %v1747
    %2307 = vmatprep.subr.bf16.mxu0 %v1755
    %2308 = vmatpush1.bf16.msra.mxu0 %v1754
    %2309 = vmatprep.subr.bf16.mxu0 %v1762
    %2310 = vmatpush1.bf16.msra.mxu0 %v1761
    %2311 = vmatprep.subr.bf16.mxu0 %v1769
    %2312 = vmatpush1.bf16.msra.mxu0 %v1768
    %2313 = vmatprep.subr.bf16.mxu0 %v1776
    %2314 = vmatpush1.bf16.msra.mxu0 %v1775
    %2315 = vmatprep.subr.bf16.mxu0 %v1783
    %2316 = vmatpush1.bf16.msra.mxu0 %v1782
    %2317 = vmatprep.mubr.bf16.mxu0 %v673
    %2318 = vmatmul.mubr.bf16.gmra.mrb[0].mxu0 %v672
    %v2319 = vpop.f32.mrb[0].mxu0
    %v2320 = vadd.f32 %v953, %v2319
    %v2321 = vpop.f32.mrb[0].mxu0
    %v2322 = vadd.f32 %v957, %v2321
    %v2323 = vpop.f32.mrb[0].mxu0
    %v2324 = vpop.f32.mrb[0].mxu0
    %2325 = vdwg.mxu0
    %2326 = vmatprep.subr.bf16.mxu0 %v1790
    %2327 = vmatpush1.bf16.msra.mxu0 %v1789
    %2328 = vmatprep.subr.bf16.mxu0 %v1797
    %2329 = vmatpush1.bf16.msra.mxu0 %v1796
    %2330 = vmatprep.subr.bf16.mxu0 %v1804
    %2331 = vmatpush1.bf16.msra.mxu0 %v1803
    %2332 = vmatprep.subr.bf16.mxu0 %v1811
    %2333 = vmatpush1.bf16.msra.mxu0 %v1810
    %2334 = vmatprep.subr.bf16.mxu0 %v1818
    %2335 = vmatpush1.bf16.msra.mxu0 %v1817
    %2336 = vmatprep.subr.bf16.mxu0 %v1825
    %2337 = vmatpush1.bf16.msra.mxu0 %v1824
    %2338 = vmatprep.subr.bf16.mxu0 %v1832
    %2339 = vmatpush1.bf16.msra.mxu0 %v1831
    %2340 = vmatprep.subr.bf16.mxu0 %v1839
    %2341 = vmatpush1.bf16.msra.mxu0 %v1838
    %2342 = vmatprep.subr.bf16.mxu0 %v1846
    %2343 = vmatpush1.bf16.msra.mxu0 %v1845
    %2344 = vmatprep.subr.bf16.mxu0 %v1853
    %2345 = vmatpush1.bf16.msra.mxu0 %v1852
    %2346 = vmatprep.subr.bf16.mxu0 %v1860
    %2347 = vmatpush1.bf16.msra.mxu0 %v1859
    %2348 = vmatprep.subr.bf16.mxu0 %v1867
    %2349 = vmatpush1.bf16.msra.mxu0 %v1866
    %2350 = vmatprep.subr.bf16.mxu0 %v1874
    %2351 = vmatpush1.bf16.msra.mxu0 %v1873
    %2352 = vmatprep.subr.bf16.mxu0 %v1881
    %2353 = vmatpush1.bf16.msra.mxu0 %v1880
    %2354 = vmatprep.subr.bf16.mxu0 %v1888
    %2355 = vmatpush1.bf16.msra.mxu0 %v1887
    %2356 = vmatprep.subr.bf16.mxu0 %v1895
    %2357 = vmatpush1.bf16.msra.mxu0 %v1894
    %2358 = vmatprep.mubr.bf16.mxu0 %v675
    %2359 = vmatmul.mubr.bf16.gmra.mrb[0].mxu0 %v674
    %v2360 = vpop.f32.mrb[0].mxu0
    %v2361 = vadd.f32 %v2320, %v2360
    %v2362 = vpop.f32.mrb[0].mxu0
    %v2363 = vadd.f32 %v2322, %v2362
    %v2364 = vpop.f32.mrb[0].mxu0
    %v2365 = vpop.f32.mrb[0].mxu0
    %2366 = vdwg.mxu0
    %2367 = vmatprep.subr.bf16.mxu0 0
    %2368 = vmatpush1.bf16.msra.mxu0 %v1679
    %2369 = vmatprep.subr.bf16.mxu0 0
    %2370 = vmatpush1.bf16.msra.mxu0 %v1686
    %2371 = vmatprep.subr.bf16.mxu0 0
    %2372 = vmatpush1.bf16.msra.mxu0 %v1693
    %2373 = vmatprep.subr.bf16.mxu0 0
    %2374 = vmatpush1.bf16.msra.mxu0 %v1700
    %2375 = vmatprep.subr.bf16.mxu0 0
    %2376 = vmatpush1.bf16.msra.mxu0 %v1707
    %2377 = vmatprep.subr.bf16.mxu0 0
    %2378 = vmatpush1.bf16.msra.mxu0 %v1714
    %2379 = vmatprep.subr.bf16.mxu0 0
    %2380 = vmatpush1.bf16.msra.mxu0 %v1721
    %2381 = vmatprep.subr.bf16.mxu0 0
    %2382 = vmatpush1.bf16.msra.mxu0 %v1728
    %2383 = vmatprep.subr.bf16.mxu0 0
    %2384 = vmatpush1.bf16.msra.mxu0 %v1735
    %2385 = vmatprep.subr.bf16.mxu0 0
    %2386 = vmatpush1.bf16.msra.mxu0 %v1742
    %2387 = vmatprep.subr.bf16.mxu0 0
    %2388 = vmatpush1.bf16.msra.mxu0 %v1749
    %2389 = vmatprep.subr.bf16.mxu0 0
    %2390 = vmatpush1.bf16.msra.mxu0 %v1756
    %2391 = vmatprep.subr.bf16.mxu0 0
    %2392 = vmatpush1.bf16.msra.mxu0 %v1763
    %2393 = vmatprep.subr.bf16.mxu0 0
    %2394 = vmatpush1.bf16.msra.mxu0 %v1770
    %2395 = vmatprep.subr.bf16.mxu0 0
    %2396 = vmatpush1.bf16.msra.mxu0 %v1777
    %2397 = vmatprep.subr.bf16.mxu0 0
    %2398 = vmatpush1.bf16.msra.mxu0 %v1784
    %2399 = vmatprep.mubr.bf16.mxu0 %v673
    %2400 = vmatmul.mubr.bf16.gmra.mrb[0].mxu0 %v672
    %v2401 = vpop.f32.mrb[0].mxu0
    %v2402 = vadd.f32 %v961, %v2401
    %v2403 = vpop.f32.mrb[0].mxu0
    %v2404 = vpop.f32.mrb[0].mxu0
    %v2405 = vpop.f32.mrb[0].mxu0
    %2406 = vdwg.mxu0
    %2407 = vmatprep.subr.bf16.mxu0 0
    %2408 = vmatpush1.bf16.msra.mxu0 %v1791
    %2409 = vmatprep.subr.bf16.mxu0 0
    %2410 = vmatpush1.bf16.msra.mxu0 %v1798
    %2411 = vmatprep.subr.bf16.mxu0 0
    %2412 = vmatpush1.bf16.msra.mxu0 %v1805
    %2413 = vmatprep.subr.bf16.mxu0 0
    %2414 = vmatpush1.bf16.msra.mxu0 %v1812
    %2415 = vmatprep.subr.bf16.mxu0 0
    %2416 = vmatpush1.bf16.msra.mxu0 %v1819
    %2417 = vmatprep.subr.bf16.mxu0 0
    %2418 = vmatpush1.bf16.msra.mxu0 %v1826
    %2419 = vmatprep.subr.bf16.mxu0 0
    %2420 = vmatpush1.bf16.msra.mxu0 %v1833
    %2421 = vmatprep.subr.bf16.mxu0 0
    %2422 = vmatpush1.bf16.msra.mxu0 %v1840
    %2423 = vmatprep.subr.bf16.mxu0 0
    %2424 = vmatpush1.bf16.msra.mxu0 %v1847
    %2425 = vmatprep.subr.bf16.mxu0 0
    %2426 = vmatpush1.bf16.msra.mxu0 %v1854
    %2427 = vmatprep.subr.bf16.mxu0 0
    %2428 = vmatpush1.bf16.msra.mxu0 %v1861
    %2429 = vmatprep.subr.bf16.mxu0 0
    %2430 = vmatpush1.bf16.msra.mxu0 %v1868
    %2431 = vmatprep.subr.bf16.mxu0 0
    %2432 = vmatpush1.bf16.msra.mxu0 %v1875
    %2433 = vmatprep.subr.bf16.mxu0 0
    %2434 = vmatpush1.bf16.msra.mxu0 %v1882
    %2435 = vmatprep.subr.bf16.mxu0 0
    %2436 = vmatpush1.bf16.msra.mxu0 %v1889
    %2437 = vmatprep.subr.bf16.mxu0 0
    %2438 = vmatpush1.bf16.msra.mxu0 %v1896
    %2439 = vmatprep.mubr.bf16.mxu0 %v675
    %2440 = vmatmul.mubr.bf16.gmra.mrb[0].mxu0 %v674
    %v2441 = vpop.f32.mrb[0].mxu0
    %v2442 = vadd.f32 %v2402, %v2441
    %v2443 = vpop.f32.mrb[0].mxu0
    %v2444 = vpop.f32.mrb[0].mxu0
    %v2445 = vpop.f32.mrb[0].mxu0
    %2446 = vdwg.mxu0
    %v2447 = vtanh.pop %v2197
    %v2448 = vtanh.pop %v2199
    %v2449 = vtanh.pop %v2279
    %v2450 = vtanh.pop %v2281
    %v2451 = vtanh.pop %v2361
    %v2452 = vtanh.pop %v2363
    %v2453 = vtanh.pop %v2442
    %2454 = vst [vmem:[#allocation10] sm:$0xff] %v2447
    %2455 = vst [vmem:[#allocation10 + $0x8] sm:$0xff] %v2448
    %2456 = vst [vmem:[#allocation10 + $0x10] sm:$0xff] %v2449
    %2457 = vst [vmem:[#allocation10 + $0x18] sm:$0xff] %v2450
    %2458 = vst [vmem:[#allocation10 + $0x20] sm:$0xff] %v2451
    %2459 = vst [vmem:[#allocation10 + $0x28] sm:$0xff] %v2452
    %2460 = vst [vmem:[#allocation10 + $0x30] sm:$0xff] %v2453
    // Predicated region
    $region46: #{tpu_custom_call.1} parent=1 // pred_check
      _
    $region47: #{tpu_custom_call.1} parent=1 // pred_check_branch
      %2462 = sbr.rel (0) target = $region49
    $region48: #{tpu_custom_call.1} parent=1 // pred_region
      %s2464 = ssub.s32 896, 896
      %2465 = vsyncadd [#allocation4], %s2464
      %s2467 = sshll.u32 [#allocation10], 4
      %s2468 = int_to_ptr.vmem [resolvable:$true] %s2467
      %2470 = dma.vmem_to_hbm [thread:$0]  %s2468, 896, %s7, [#allocation4]
    $region49: #{tpu_custom_call.1} parent=1 // pred_fallthru
      _
    // Predicated region
    $region50: #{tpu_custom_call.1} parent=1 // pred_check
      _
    $region51: #{tpu_custom_call.1} parent=1 // pred_check_branch
      %2472 = sbr.rel (0) target = $region53
    $region52: #{tpu_custom_call.1} parent=1 // pred_region
      %2473 = dma.done [#allocation4], 896
    $region53: #{tpu_custom_call.1} parent=1 // pred_fallthru
      _
    %2474 = vsyncpa [#allocation3], 1
    %2475 = vsyncpa [#allocation6], 1
    %2476 = vsyncpa [#allocation9], 1
    %2477 = vsyncpa [#allocation4], 1

</llo_original>
